<compile_context>
chip_gen: v7x
topology: tpu7x:2x2x1
jax: 0.10.0
libtpu: 0.0.40
codegen_flags: <defaults>
</compile_context>

<pallas_src>
import math
from functools import partial

import jax
import jax.numpy as jnp
from jax.experimental import pallas as pl
from jax.experimental.pallas import tpu as pltpu


def transformer_block_kernel(
    x_q_ref, x_kv_ref, m_ref,
    wq_ref, bq_ref, wkv_ref, bkv_ref, wo_ref, bo_ref,
    w1_ref, b1_ref, w2_ref, b2_ref,
    ln1w_ref, ln1b_ref, ln2w_ref, ln2b_ref,
    out_ref,
    *, num_heads, eps, compute_dtype,
):
    f32 = jnp.float32
    cd = compute_dtype

    xq_res = x_q_ref[0].astype(f32)      # residual path stays f32
    xq = x_q_ref[0].astype(cd)           # matmul inputs in compute dtype (bf16)
    xkv = x_kv_ref[0].astype(cd)
    TQ, D = xq.shape
    S = xkv.shape[0]
    H = num_heads
    Dh = D // H
    scale = 1.0 / math.sqrt(Dh)

    # ---- projections: Q for the query tile, fused K|V for the full sequence ----
    q = jnp.dot(xq, wq_ref[...], preferred_element_type=f32) + bq_ref[...]
    kv = jnp.dot(xkv, wkv_ref[...], preferred_element_type=f32) + bkv_ref[...]
    k = kv[:, :D]
    v = kv[:, D:]

    # ---- split heads once (contiguous D-chunks == torch view+transpose order) ----
    q = q.astype(cd); k = k.astype(cd); v = v.astype(cd)
    qh = jnp.stack([q[:, h * Dh:(h + 1) * Dh] for h in range(H)], axis=0)  # (H,TQ,Dh)
    kh = jnp.stack([k[:, h * Dh:(h + 1) * Dh] for h in range(H)], axis=0)  # (H,S,Dh)
    vh = jnp.stack([v[:, h * Dh:(h + 1) * Dh] for h in range(H)], axis=0)  # (H,S,Dh)

    # ---- one batched MXU stream over all heads, f32 accumulation ----
    corr = jnp.einsum("hqd,hkd->hqk", qh, kh, preferred_element_type=f32) * scale

    # query-row masking (masked rows -> uniform softmax), hoisted out of heads
    row_masked = m_ref[0] == 0.0                         # (TQ, 1)
    corr = jnp.where(row_masked[None, :, :], -1e9, corr)

    corr = corr - jnp.max(corr, axis=-1, keepdims=True)
    e = jnp.exp(corr)
    denom = jnp.sum(e, axis=-1, keepdims=True)
    p = e * pl.reciprocal(denom, approx=True)            # divide on EUP slot

    ctx = jnp.einsum("hqk,hkd->hqd", p.astype(cd), vh, preferred_element_type=f32)
    ctx2d = jnp.concatenate([ctx[h] for h in range(H)], axis=-1)           # (TQ, D)

    attn = jnp.dot(ctx2d.astype(cd), wo_ref[...], preferred_element_type=f32) + bo_ref[...]

    # ---- SublayerConnection #1: residual + TF-style LayerNorm (f32) ----
    h1 = xq_res + attn
    u1 = jnp.mean(h1, axis=-1, keepdims=True)
    s1 = jnp.mean((h1 - u1) ** 2, axis=-1, keepdims=True)
    h1 = (h1 - u1) * jax.lax.rsqrt(s1 + eps)
    h1 = ln1w_ref[...] * h1 + ln1b_ref[...]

    # ---- position-wise FFN with tanh-GELU ----
    # TODO(synk): for large D/S, tile the 4D hidden dim with a VMEM accumulator
    #             instead of materializing the full (TQ, 4D) f32 intermediate.
    a = jnp.dot(h1.astype(cd), w1_ref[...], preferred_element_type=f32) + b1_ref[...]
    g = 0.5 * a * (1.0 + jnp.tanh(math.sqrt(2.0 / math.pi) * (a + 0.044715 * a ** 3)))
    f = jnp.dot(g.astype(cd), w2_ref[...], preferred_element_type=f32) + b2_ref[...]

    # ---- SublayerConnection #2: residual + LayerNorm ----
    h2 = h1 + f
    u2 = jnp.mean(h2, axis=-1, keepdims=True)
    s2 = jnp.mean((h2 - u2) ** 2, axis=-1, keepdims=True)
    h2 = (h2 - u2) * jax.lax.rsqrt(s2 + eps)
    h2 = ln2w_ref[...] * h2 + ln2b_ref[...]

    out_ref[0] = h2.astype(out_ref.dtype)


def transformer_block(x, mask, params, *, num_heads, eps=1e-12,
                      compute_dtype=jnp.bfloat16):
    B, S, D = x.shape
    assert D % num_heads == 0
    f32 = jnp.float32
    cd = compute_dtype

    # Query-tile size: largest of {512, 256, 128} dividing S, else the full seq.
    tq = S
    for cand in (512, 256, 128):
        if S >= cand and S % cand == 0:
            tq = cand
            break
    n_q = S // tq

    m = mask.reshape(B, S, 1).astype(f32)

    weight_args = [
        params["wq"].astype(cd), params["bq"].astype(f32),
        jnp.concatenate([params["wk"], params["wv"]], axis=1).astype(cd),   # fused K|V
        jnp.concatenate([params["bk"], params["bv"]], axis=1).astype(f32),
        params["wo"].astype(cd), params["bo"].astype(f32),
        params["w1"].astype(cd), params["b1"].astype(f32),
        params["w2"].astype(cd), params["b2"].astype(f32),
        params["ln1_w"].astype(f32), params["ln1_b"].astype(f32),
        params["ln2_w"].astype(f32), params["ln2_b"].astype(f32),
    ]
    # Resident, single-buffered weights: whole-array VMEM operands (no per-step
    # double-buffered DMA of the weight set).
    weight_specs = [pl.BlockSpec(memory_space=pltpu.MemorySpace.VMEM)
                    for _ in weight_args]

    flops = int(2 * B * S * (12 * D * D + 2 * S * D))
    transcendentals = int(B * num_heads * S * S + 4 * B * S * D)
    bytes_accessed = int(
        2 * x.size * x.dtype.itemsize            # x read for the q-tile and K/V paths
        + m.size * 4
        + B * S * D * 4                          # output
        + sum(int(w.size) * w.dtype.itemsize for w in weight_args))

    kernel = partial(transformer_block_kernel, num_heads=num_heads, eps=eps,
                     compute_dtype=cd)
    return pl.pallas_call(
        kernel,
        out_shape=jax.ShapeDtypeStruct((B, S, D), jnp.float32),
        grid=(B, n_q),
        in_specs=[
            pl.BlockSpec((1, tq, D), lambda b, q: (b, q, 0)),   # query tile of x
            pl.BlockSpec((1, S, D), lambda b, q: (b, 0, 0)),    # full-seq x for K/V
            pl.BlockSpec((1, tq, 1), lambda b, q: (b, q, 0)),   # query-row mask
            *weight_specs,
        ],
        out_specs=pl.BlockSpec((1, tq, D), lambda b, q: (b, q, 0)),
        compiler_params=pltpu.CompilerParams(
            dimension_semantics=("parallel", "parallel"),
            vmem_limit_bytes=64 * 1024 * 1024,
        ),
        cost_estimate=pl.CostEstimate(
            flops=flops, transcendentals=transcendentals,
            bytes_accessed=bytes_accessed),
    )(x, x, m, *weight_args)


def reference(x, mask, p, num_heads, eps=1e-12, compute_dtype=jnp.bfloat16):
    """Pure-JAX mirror of the PyTorch forward (dropout = identity).

    Mirrors the kernel's bf16 matmul inputs / f32 accumulation so the
    correctness check isolates semantics rather than quantization error.
    """
    B, S, D = x.shape
    H = num_heads
    Dh = D // H
    scale = 1.0 / math.sqrt(Dh)
    f32 = jnp.float32
    cd = compute_dtype

    def lin(t, w, b):
        return jnp.dot(t.astype(cd), w.astype(cd),
                       preferred_element_type=f32) + b.astype(f32)

    q = lin(x, p["wq"], p["bq"]).reshape(B, S, H, Dh).transpose(0, 2, 1, 3).astype(cd)
    k = lin(x, p["wk"], p["bk"]).reshape(B, S, H, Dh).transpose(0, 2, 1, 3).astype(cd)
    v = lin(x, p["wv"], p["bv"]).reshape(B, S, H, Dh).transpose(0, 2, 1, 3).astype(cd)
    corr = jnp.einsum("bhqd,bhkd->bhqk", q, k, preferred_element_type=f32) * scale
    corr = jnp.where(mask[:, None, :, None] == 0, -1e9, corr)
    corr = corr - jnp.max(corr, axis=-1, keepdims=True)
    e = jnp.exp(corr)
    prob = e / jnp.sum(e, axis=-1, keepdims=True)
    ctx = jnp.einsum("bhqk,bhkd->bhqd", prob.astype(cd), v, preferred_element_type=f32)
    hid = ctx.transpose(0, 2, 1, 3).reshape(B, S, D)
    attn = lin(hid, p["wo"], p["bo"])

    def ln(t, w, b):
        u = t.mean(-1, keepdims=True)
        s = ((t - u) ** 2).mean(-1, keepdims=True)
        return w.astype(f32) * ((t - u) / jnp.sqrt(s + eps)) + b.astype(f32)

    h1 = ln(x + attn, p["ln1_w"], p["ln1_b"])
    a = lin(h1, p["w1"], p["b1"])
    g = 0.5 * a * (1.0 + jnp.tanh(math.sqrt(2.0 / math.pi) * (a + 0.044715 * a ** 3)))
    f = lin(g, p["w2"], p["b2"])
    return ln(h1 + f, p["ln2_w"], p["ln2_b"])


def make_params(key, hidden_size):
    D = hidden_size
    keys = jax.random.split(key, 8)

    def xavier(k, fan_in, fan_out):
        std = math.sqrt(2.0 / (fan_in + fan_out))
        return jax.random.normal(k, (fan_in, fan_out), jnp.float32) * std

    return {
        "wq": xavier(keys[0], D, D), "bq": jnp.zeros((1, D), jnp.float32),
        "wk": xavier(keys[1], D, D), "bk": jnp.zeros((1, D), jnp.float32),
        "wv": xavier(keys[2], D, D), "bv": jnp.zeros((1, D), jnp.float32),
        "wo": xavier(keys[3], D, D), "bo": jnp.zeros((1, D), jnp.float32),
        "w1": xavier(keys[4], D, 4 * D), "b1": jnp.zeros((1, 4 * D), jnp.float32),
        "w2": xavier(keys[5], 4 * D, D), "b2": jnp.zeros((1, D), jnp.float32),
        "ln1_w": jnp.ones((1, D), jnp.float32), "ln1_b": jnp.zeros((1, D), jnp.float32),
        "ln2_w": jnp.ones((1, D), jnp.float32), "ln2_b": jnp.zeros((1, D), jnp.float32),
    }


if __name__ == "__main__":
    B, S, D, H = 2, 8, 32, 4

    root = jax.random.PRNGKey(0)
    kx, kmask, kp = jax.random.split(root, 3)

    x = jax.random.normal(kx, (B, S, D), jnp.float32)
    mask = (jax.random.uniform(kmask, (B, S)) > 0.3).astype(jnp.float32)  # 1=keep, 0=masked
    params = make_params(kp, D)

    out = transformer_block(x, mask, params, num_heads=H)
    out = jax.block_until_ready(out)

    ref = reference(x, mask, params, num_heads=H)
    assert out.shape == (B, S, D)
    err = jnp.max(jnp.abs(out - ref))
    # Tolerance covers the approx-reciprocal softmax divide and bf16/f32
    # reduction-order differences (reference mirrors the bf16 matmul casts).
    assert jnp.allclose(out, ref, atol=1e-2, rtol=1e-2), f"max abs err {err}"
    print("KERNEL_OK")
</pallas_src>

<mosaic_0001>
module attributes {stable_mosaic.version = 11 : i64} {
  func.func @transformer_block_kernel(%arg0: i32, %arg1: i32, %arg2: memref<1x8x32xf32, #tpu.memory_space<vmem>>, %arg3: memref<1x8x32xf32, #tpu.memory_space<vmem>>, %arg4: memref<1x8x1xf32, #tpu.memory_space<vmem>>, %arg5: memref<32x32xbf16, #tpu.memory_space<vmem>>, %arg6: memref<1x32xf32, #tpu.memory_space<vmem>>, %arg7: memref<32x64xbf16, #tpu.memory_space<vmem>>, %arg8: memref<1x64xf32, #tpu.memory_space<vmem>>, %arg9: memref<32x32xbf16, #tpu.memory_space<vmem>>, %arg10: memref<1x32xf32, #tpu.memory_space<vmem>>, %arg11: memref<32x128xbf16, #tpu.memory_space<vmem>>, %arg12: memref<1x128xf32, #tpu.memory_space<vmem>>, %arg13: memref<128x32xbf16, #tpu.memory_space<vmem>>, %arg14: memref<1x32xf32, #tpu.memory_space<vmem>>, %arg15: memref<1x32xf32, #tpu.memory_space<vmem>>, %arg16: memref<1x32xf32, #tpu.memory_space<vmem>>, %arg17: memref<1x32xf32, #tpu.memory_space<vmem>>, %arg18: memref<1x32xf32, #tpu.memory_space<vmem>>, %arg19: memref<1x8x32xf32, #tpu.memory_space<vmem>>) attributes {dimension_semantics = [#tpu.dimension_semantics<parallel>, #tpu.dimension_semantics<parallel>], iteration_bounds = array<i64: 2, 1>, scalar_prefetch = 0 : i64, scratch_operands = 0 : i64, tpu.core_type = #tpu.core_type<tc>, window_params = [{transform_indices = @transform_0, window_bounds = array<i64: 1, 8, 32>}, {transform_indices = @transform_1, window_bounds = array<i64: 1, 8, 32>}, {transform_indices = @transform_2, window_bounds = array<i64: 1, 8, 1>}, {pipeline_mode = #tpu.pipeline_mode<synchronous>, transform_indices = @transform_3, window_bounds = array<i64: 32, 32>}, {pipeline_mode = #tpu.pipeline_mode<synchronous>, transform_indices = @transform_4, window_bounds = array<i64: 1, 32>}, {pipeline_mode = #tpu.pipeline_mode<synchronous>, transform_indices = @transform_5, window_bounds = array<i64: 32, 64>}, {pipeline_mode = #tpu.pipeline_mode<synchronous>, transform_indices = @transform_6, window_bounds = array<i64: 1, 64>}, {pipeline_mode = #tpu.pipeline_mode<synchronous>, transform_indices = @transform_7, window_bounds = array<i64: 32, 32>}, {pipeline_mode = #tpu.pipeline_mode<synchronous>, transform_indices = @transform_8, window_bounds = array<i64: 1, 32>}, {pipeline_mode = #tpu.pipeline_mode<synchronous>, transform_indices = @transform_9, window_bounds = array<i64: 32, 128>}, {pipeline_mode = #tpu.pipeline_mode<synchronous>, transform_indices = @transform_10, window_bounds = array<i64: 1, 128>}, {pipeline_mode = #tpu.pipeline_mode<synchronous>, transform_indices = @transform_11, window_bounds = array<i64: 128, 32>}, {pipeline_mode = #tpu.pipeline_mode<synchronous>, transform_indices = @transform_12, window_bounds = array<i64: 1, 32>}, {pipeline_mode = #tpu.pipeline_mode<synchronous>, transform_indices = @transform_13, window_bounds = array<i64: 1, 32>}, {pipeline_mode = #tpu.pipeline_mode<synchronous>, transform_indices = @transform_14, window_bounds = array<i64: 1, 32>}, {pipeline_mode = #tpu.pipeline_mode<synchronous>, transform_indices = @transform_15, window_bounds = array<i64: 1, 32>}, {pipeline_mode = #tpu.pipeline_mode<synchronous>, transform_indices = @transform_16, window_bounds = array<i64: 1, 32>}, {transform_indices = @transform_17, window_bounds = array<i64: 1, 8, 32>}]} {
    %c0 = arith.constant 0 : index
    %c0_0 = arith.constant 0 : index
    %c0_1 = arith.constant 0 : index
    %0 = vector.load %arg2[%c0, %c0_0, %c0_1] : memref<1x8x32xf32, #tpu.memory_space<vmem>>, vector<1x8x32xf32>
    %1 = vector.shape_cast %0 : vector<1x8x32xf32> to vector<8x32xf32>
    %c0_2 = arith.constant 0 : index
    %c0_3 = arith.constant 0 : index
    %c0_4 = arith.constant 0 : index
    %2 = vector.load %arg2[%c0_2, %c0_3, %c0_4] : memref<1x8x32xf32, #tpu.memory_space<vmem>>, vector<1x8x32xf32>
    %3 = vector.shape_cast %2 : vector<1x8x32xf32> to vector<8x32xf32>
    %4 = arith.truncf %3 : vector<8x32xf32> to vector<8x32xbf16>
    %c0_5 = arith.constant 0 : index
    %c0_6 = arith.constant 0 : index
    %c0_7 = arith.constant 0 : index
    %5 = vector.load %arg3[%c0_5, %c0_6, %c0_7] : memref<1x8x32xf32, #tpu.memory_space<vmem>>, vector<1x8x32xf32>
    %6 = vector.shape_cast %5 : vector<1x8x32xf32> to vector<8x32xf32>
    %7 = arith.truncf %6 : vector<8x32xf32> to vector<8x32xbf16>
    %c0_8 = arith.constant 0 : index
    %c0_9 = arith.constant 0 : index
    %8 = vector.load %arg5[%c0_8, %c0_9] : memref<32x32xbf16, #tpu.memory_space<vmem>>, vector<32x32xbf16>
    %cst = arith.constant dense<0.000000e+00> : vector<8x32xf32>
    %9 = tpu.matmul %4, %8, %cst {dimension_numbers = #tpu.dot_dimension_numbers<[1], [0], [0], [1], [0, 0, 1, 1], [], []>} : vector<8x32xbf16>, vector<32x32xbf16>, vector<8x32xf32> -> vector<8x32xf32>
    %c0_10 = arith.constant 0 : index
    %c0_11 = arith.constant 0 : index
    %10 = vector.load %arg6[%c0_10, %c0_11] : memref<1x32xf32, #tpu.memory_space<vmem>>, vector<1x32xf32>
    %11 = vector.broadcast %10 : vector<1x32xf32> to vector<8x32xf32>
    %12 = arith.addf %9, %11 : vector<8x32xf32>
    %c0_12 = arith.constant 0 : index
    %c0_13 = arith.constant 0 : index
    %13 = vector.load %arg7[%c0_12, %c0_13] : memref<32x64xbf16, #tpu.memory_space<vmem>>, vector<32x64xbf16>
    %cst_14 = arith.constant dense<0.000000e+00> : vector<8x64xf32>
    %14 = tpu.matmul %7, %13, %cst_14 {dimension_numbers = #tpu.dot_dimension_numbers<[1], [0], [0], [1], [0, 0, 1, 1], [], []>} : vector<8x32xbf16>, vector<32x64xbf16>, vector<8x64xf32> -> vector<8x64xf32>
    %c0_15 = arith.constant 0 : index
    %c0_16 = arith.constant 0 : index
    %15 = vector.load %arg8[%c0_15, %c0_16] : memref<1x64xf32, #tpu.memory_space<vmem>>, vector<1x64xf32>
    %16 = vector.broadcast %15 : vector<1x64xf32> to vector<8x64xf32>
    %17 = arith.addf %14, %16 : vector<8x64xf32>
    %18 = vector.extract_strided_slice %17 {offsets = [0, 0], sizes = [8, 32], strides = [1, 1]} : vector<8x64xf32> to vector<8x32xf32>
    %19 = vector.extract_strided_slice %17 {offsets = [0, 32], sizes = [8, 32], strides = [1, 1]} : vector<8x64xf32> to vector<8x32xf32>
    %20 = arith.truncf %12 : vector<8x32xf32> to vector<8x32xbf16>
    %21 = arith.truncf %18 : vector<8x32xf32> to vector<8x32xbf16>
    %22 = arith.truncf %19 : vector<8x32xf32> to vector<8x32xbf16>
    %23 = vector.extract_strided_slice %20 {offsets = [0, 0], sizes = [8, 8], strides = [1, 1]} : vector<8x32xbf16> to vector<8x8xbf16>
    %24 = vector.extract_strided_slice %20 {offsets = [0, 8], sizes = [8, 8], strides = [1, 1]} : vector<8x32xbf16> to vector<8x8xbf16>
    %25 = vector.extract_strided_slice %20 {offsets = [0, 16], sizes = [8, 8], strides = [1, 1]} : vector<8x32xbf16> to vector<8x8xbf16>
    %26 = vector.extract_strided_slice %20 {offsets = [0, 24], sizes = [8, 8], strides = [1, 1]} : vector<8x32xbf16> to vector<8x8xbf16>
    %27 = vector.shape_cast %23 : vector<8x8xbf16> to vector<1x8x8xbf16>
    %28 = vector.shape_cast %24 : vector<8x8xbf16> to vector<1x8x8xbf16>
    %29 = vector.shape_cast %25 : vector<8x8xbf16> to vector<1x8x8xbf16>
    %30 = vector.shape_cast %26 : vector<8x8xbf16> to vector<1x8x8xbf16>
    %31 = tpu.concatenate %27, %28, %29, %30 in 0 : vector<1x8x8xbf16>, vector<1x8x8xbf16>, vector<1x8x8xbf16>, vector<1x8x8xbf16> -> vector<4x8x8xbf16>
    %32 = vector.extract_strided_slice %21 {offsets = [0, 0], sizes = [8, 8], strides = [1, 1]} : vector<8x32xbf16> to vector<8x8xbf16>
    %33 = vector.extract_strided_slice %21 {offsets = [0, 8], sizes = [8, 8], strides = [1, 1]} : vector<8x32xbf16> to vector<8x8xbf16>
    %34 = vector.extract_strided_slice %21 {offsets = [0, 16], sizes = [8, 8], strides = [1, 1]} : vector<8x32xbf16> to vector<8x8xbf16>
    %35 = vector.extract_strided_slice %21 {offsets = [0, 24], sizes = [8, 8], strides = [1, 1]} : vector<8x32xbf16> to vector<8x8xbf16>
    %36 = vector.shape_cast %32 : vector<8x8xbf16> to vector<1x8x8xbf16>
    %37 = vector.shape_cast %33 : vector<8x8xbf16> to vector<1x8x8xbf16>
    %38 = vector.shape_cast %34 : vector<8x8xbf16> to vector<1x8x8xbf16>
    %39 = vector.shape_cast %35 : vector<8x8xbf16> to vector<1x8x8xbf16>
    %40 = tpu.concatenate %36, %37, %38, %39 in 0 : vector<1x8x8xbf16>, vector<1x8x8xbf16>, vector<1x8x8xbf16>, vector<1x8x8xbf16> -> vector<4x8x8xbf16>
    %41 = vector.extract_strided_slice %22 {offsets = [0, 0], sizes = [8, 8], strides = [1, 1]} : vector<8x32xbf16> to vector<8x8xbf16>
    %42 = vector.extract_strided_slice %22 {offsets = [0, 8], sizes = [8, 8], strides = [1, 1]} : vector<8x32xbf16> to vector<8x8xbf16>
    %43 = vector.extract_strided_slice %22 {offsets = [0, 16], sizes = [8, 8], strides = [1, 1]} : vector<8x32xbf16> to vector<8x8xbf16>
    %44 = vector.extract_strided_slice %22 {offsets = [0, 24], sizes = [8, 8], strides = [1, 1]} : vector<8x32xbf16> to vector<8x8xbf16>
    %45 = vector.shape_cast %41 : vector<8x8xbf16> to vector<1x8x8xbf16>
    %46 = vector.shape_cast %42 : vector<8x8xbf16> to vector<1x8x8xbf16>
    %47 = vector.shape_cast %43 : vector<8x8xbf16> to vector<1x8x8xbf16>
    %48 = vector.shape_cast %44 : vector<8x8xbf16> to vector<1x8x8xbf16>
    %49 = tpu.concatenate %45, %46, %47, %48 in 0 : vector<1x8x8xbf16>, vector<1x8x8xbf16>, vector<1x8x8xbf16>, vector<1x8x8xbf16> -> vector<4x8x8xbf16>
    "tpu.trace_start"() <{level = 10 : i32, message = "hqd,hkd->hqk"}> : () -> ()
    %cst_17 = arith.constant dense<0.000000e+00> : vector<4x8x8xf32>
    %50 = tpu.matmul %31, %40, %cst_17 {dimension_numbers = #tpu.dot_dimension_numbers<[2], [2], [1], [1], [0, 0, 0, 1, 1, 1], [0], [0]>} : vector<4x8x8xbf16>, vector<4x8x8xbf16>, vector<4x8x8xf32> -> vector<4x8x8xf32>
    "tpu.trace_stop"() : () -> ()
    %cst_18 = arith.constant 0.353553385 : f32
    %51 = vector.broadcast %cst_18 : f32 to vector<4x8x8xf32>
    %52 = arith.mulf %50, %51 : vector<4x8x8xf32>
    %c0_19 = arith.constant 0 : index
    %c0_20 = arith.constant 0 : index
    %c0_21 = arith.constant 0 : index
    %53 = vector.load %arg4[%c0_19, %c0_20, %c0_21] : memref<1x8x1xf32, #tpu.memory_space<vmem>>, vector<1x8x1xf32>
    %54 = vector.shape_cast %53 : vector<1x8x1xf32> to vector<8x1xf32>
    %cst_22 = arith.constant 0.000000e+00 : f32
    %55 = vector.broadcast %cst_22 : f32 to vector<8x1xf32>
    %56 = arith.cmpf oeq, %54, %55 : vector<8x1xf32>
    %57 = vector.shape_cast %56 : vector<8x1xi1> to vector<1x8x1xi1>
    %cst_23 = arith.constant -1.000000e+09 : f32
    %58 = vector.shape_cast %57 : vector<1x8x1xi1> to vector<1x8x1xi1>
    %59 = vector.broadcast %58 : vector<1x8x1xi1> to vector<4x8x8xi1>
    %60 = vector.broadcast %cst_23 : f32 to vector<4x8x8xf32>
    %61 = arith.select %59, %60, %52 : vector<4x8x8xi1>, vector<4x8x8xf32>
    %cst_24 = arith.constant dense<0xFF800000> : vector<4x8xf32>
    %62 = vector.multi_reduction <maximumf>, %61, %cst_24 [2] : vector<4x8x8xf32> to vector<4x8xf32>
    %63 = vector.shape_cast %62 : vector<4x8xf32> to vector<4x8x1xf32>
    %64 = vector.broadcast %63 : vector<4x8x1xf32> to vector<4x8x8xf32>
    %65 = arith.subf %61, %64 : vector<4x8x8xf32>
    %66 = math.exp %65 : vector<4x8x8xf32>
    %cst_25 = arith.constant dense<0.000000e+00> : vector<4x8xf32>
    %67 = vector.multi_reduction <add>, %66, %cst_25 [2] : vector<4x8x8xf32> to vector<4x8xf32>
    %68 = vector.shape_cast %67 : vector<4x8xf32> to vector<4x8x1xf32>
    %69 = tpu.reciprocal %68 {approx = true} : vector<4x8x1xf32> -> vector<4x8x1xf32>
    %70 = vector.broadcast %69 : vector<4x8x1xf32> to vector<4x8x8xf32>
    %71 = arith.mulf %66, %70 : vector<4x8x8xf32>
    %72 = arith.truncf %71 : vector<4x8x8xf32> to vector<4x8x8xbf16>
    "tpu.trace_start"() <{level = 10 : i32, message = "hqk,hkd->hqd"}> : () -> ()
    %cst_26 = arith.constant dense<0.000000e+00> : vector<4x8x8xf32>
    %73 = tpu.matmul %72, %49, %cst_26 {dimension_numbers = #tpu.dot_dimension_numbers<[2], [1], [1], [2], [0, 0, 0, 1, 1, 2], [0], [0]>} : vector<4x8x8xbf16>, vector<4x8x8xbf16>, vector<4x8x8xf32> -> vector<4x8x8xf32>
    "tpu.trace_stop"() : () -> ()
    %74 = vector.extract_strided_slice %73 {offsets = [0, 0, 0], sizes = [1, 8, 8], strides = [1, 1, 1]} : vector<4x8x8xf32> to vector<1x8x8xf32>
    %75 = vector.shape_cast %74 : vector<1x8x8xf32> to vector<8x8xf32>
    %76 = vector.extract_strided_slice %73 {offsets = [1, 0, 0], sizes = [1, 8, 8], strides = [1, 1, 1]} : vector<4x8x8xf32> to vector<1x8x8xf32>
    %77 = vector.shape_cast %76 : vector<1x8x8xf32> to vector<8x8xf32>
    %78 = vector.extract_strided_slice %73 {offsets = [2, 0, 0], sizes = [1, 8, 8], strides = [1, 1, 1]} : vector<4x8x8xf32> to vector<1x8x8xf32>
    %79 = vector.shape_cast %78 : vector<1x8x8xf32> to vector<8x8xf32>
    %80 = vector.extract_strided_slice %73 {offsets = [3, 0, 0], sizes = [1, 8, 8], strides = [1, 1, 1]} : vector<4x8x8xf32> to vector<1x8x8xf32>
    %81 = vector.shape_cast %80 : vector<1x8x8xf32> to vector<8x8xf32>
    %82 = tpu.concatenate %75, %77, %79, %81 in 1 : vector<8x8xf32>, vector<8x8xf32>, vector<8x8xf32>, vector<8x8xf32> -> vector<8x32xf32>
    %83 = arith.truncf %82 : vector<8x32xf32> to vector<8x32xbf16>
    %c0_27 = arith.constant 0 : index
    %c0_28 = arith.constant 0 : index
    %84 = vector.load %arg9[%c0_27, %c0_28] : memref<32x32xbf16, #tpu.memory_space<vmem>>, vector<32x32xbf16>
    %cst_29 = arith.constant dense<0.000000e+00> : vector<8x32xf32>
    %85 = tpu.matmul %83, %84, %cst_29 {dimension_numbers = #tpu.dot_dimension_numbers<[1], [0], [0], [1], [0, 0, 1, 1], [], []>} : vector<8x32xbf16>, vector<32x32xbf16>, vector<8x32xf32> -> vector<8x32xf32>
    %c0_30 = arith.constant 0 : index
    %c0_31 = arith.constant 0 : index
    %86 = vector.load %arg10[%c0_30, %c0_31] : memref<1x32xf32, #tpu.memory_space<vmem>>, vector<1x32xf32>
    %87 = vector.broadcast %86 : vector<1x32xf32> to vector<8x32xf32>
    %88 = arith.addf %85, %87 : vector<8x32xf32>
    %89 = arith.addf %1, %88 : vector<8x32xf32>
    %cst_32 = arith.constant dense<0.000000e+00> : vector<8xf32>
    %90 = vector.multi_reduction <add>, %89, %cst_32 [1] : vector<8x32xf32> to vector<8xf32>
    %91 = vector.shape_cast %90 : vector<8xf32> to vector<8x1xf32>
    %cst_33 = arith.constant 3.200000e+01 : f32
    %92 = vector.broadcast %cst_33 : f32 to vector<8x1xf32>
    %93 = arith.divf %91, %92 : vector<8x1xf32>
    %94 = vector.broadcast %93 : vector<8x1xf32> to vector<8x32xf32>
    %95 = arith.subf %89, %94 : vector<8x32xf32>
    %96 = arith.mulf %95, %95 : vector<8x32xf32>
    %cst_34 = arith.constant dense<0.000000e+00> : vector<8xf32>
    %97 = vector.multi_reduction <add>, %96, %cst_34 [1] : vector<8x32xf32> to vector<8xf32>
    %98 = vector.shape_cast %97 : vector<8xf32> to vector<8x1xf32>
    %cst_35 = arith.constant 3.200000e+01 : f32
    %99 = vector.broadcast %cst_35 : f32 to vector<8x1xf32>
    %100 = arith.divf %98, %99 : vector<8x1xf32>
    %101 = vector.broadcast %93 : vector<8x1xf32> to vector<8x32xf32>
    %102 = arith.subf %89, %101 : vector<8x32xf32>
    %cst_36 = arith.constant 9.99999996E-13 : f32
    %103 = vector.broadcast %cst_36 : f32 to vector<8x1xf32>
    %104 = arith.addf %100, %103 : vector<8x1xf32>
    %105 = math.rsqrt %104 : vector<8x1xf32>
    %106 = vector.broadcast %105 : vector<8x1xf32> to vector<8x32xf32>
    %107 = arith.mulf %102, %106 : vector<8x32xf32>
    %c0_37 = arith.constant 0 : index
    %c0_38 = arith.constant 0 : index
    %108 = vector.load %arg15[%c0_37, %c0_38] : memref<1x32xf32, #tpu.memory_space<vmem>>, vector<1x32xf32>
    %109 = vector.broadcast %108 : vector<1x32xf32> to vector<8x32xf32>
    %110 = arith.mulf %109, %107 : vector<8x32xf32>
    %c0_39 = arith.constant 0 : index
    %c0_40 = arith.constant 0 : index
    %111 = vector.load %arg16[%c0_39, %c0_40] : memref<1x32xf32, #tpu.memory_space<vmem>>, vector<1x32xf32>
    %112 = vector.broadcast %111 : vector<1x32xf32> to vector<8x32xf32>
    %113 = arith.addf %110, %112 : vector<8x32xf32>
    %114 = arith.truncf %113 : vector<8x32xf32> to vector<8x32xbf16>
    %c0_41 = arith.constant 0 : index
    %c0_42 = arith.constant 0 : index
    %115 = vector.load %arg11[%c0_41, %c0_42] : memref<32x128xbf16, #tpu.memory_space<vmem>>, vector<32x128xbf16>
    %cst_43 = arith.constant dense<0.000000e+00> : vector<8x128xf32>
    %116 = tpu.matmul %114, %115, %cst_43 {dimension_numbers = #tpu.dot_dimension_numbers<[1], [0], [0], [1], [0, 0, 1, 1], [], []>} : vector<8x32xbf16>, vector<32x128xbf16>, vector<8x128xf32> -> vector<8x128xf32>
    %c0_44 = arith.constant 0 : index
    %c0_45 = arith.constant 0 : index
    %117 = vector.load %arg12[%c0_44, %c0_45] : memref<1x128xf32, #tpu.memory_space<vmem>>, vector<1x128xf32>
    %118 = vector.broadcast %117 : vector<1x128xf32> to vector<8x128xf32>
    %119 = arith.addf %116, %118 : vector<8x128xf32>
    %cst_46 = arith.constant 5.000000e-01 : f32
    %120 = vector.broadcast %cst_46 : f32 to vector<8x128xf32>
    %121 = arith.mulf %120, %119 : vector<8x128xf32>
    %122 = arith.mulf %119, %119 : vector<8x128xf32>
    %123 = arith.mulf %119, %122 : vector<8x128xf32>
    %cst_47 = arith.constant 4.471500e-02 : f32
    %124 = vector.broadcast %cst_47 : f32 to vector<8x128xf32>
    %125 = arith.mulf %124, %123 : vector<8x128xf32>
    %126 = arith.addf %119, %125 : vector<8x128xf32>
    %cst_48 = arith.constant 0.797884583 : f32
    %127 = vector.broadcast %cst_48 : f32 to vector<8x128xf32>
    %128 = arith.mulf %127, %126 : vector<8x128xf32>
    %129 = math.tanh %128 : vector<8x128xf32>
    %cst_49 = arith.constant 1.000000e+00 : f32
    %130 = vector.broadcast %cst_49 : f32 to vector<8x128xf32>
    %131 = arith.addf %130, %129 : vector<8x128xf32>
    %132 = arith.mulf %121, %131 : vector<8x128xf32>
    %133 = arith.truncf %132 : vector<8x128xf32> to vector<8x128xbf16>
    %c0_50 = arith.constant 0 : index
    %c0_51 = arith.constant 0 : index
    %134 = vector.load %arg13[%c0_50, %c0_51] : memref<128x32xbf16, #tpu.memory_space<vmem>>, vector<128x32xbf16>
    %cst_52 = arith.constant dense<0.000000e+00> : vector<8x32xf32>
    %135 = tpu.matmul %133, %134, %cst_52 {dimension_numbers = #tpu.dot_dimension_numbers<[1], [0], [0], [1], [0, 0, 1, 1], [], []>} : vector<8x128xbf16>, vector<128x32xbf16>, vector<8x32xf32> -> vector<8x32xf32>
    %c0_53 = arith.constant 0 : index
    %c0_54 = arith.constant 0 : index
    %136 = vector.load %arg14[%c0_53, %c0_54] : memref<1x32xf32, #tpu.memory_space<vmem>>, vector<1x32xf32>
    %137 = vector.broadcast %136 : vector<1x32xf32> to vector<8x32xf32>
    %138 = arith.addf %135, %137 : vector<8x32xf32>
    %139 = arith.addf %113, %138 : vector<8x32xf32>
    %cst_55 = arith.constant dense<0.000000e+00> : vector<8xf32>
    %140 = vector.multi_reduction <add>, %139, %cst_55 [1] : vector<8x32xf32> to vector<8xf32>
    %141 = vector.shape_cast %140 : vector<8xf32> to vector<8x1xf32>
    %cst_56 = arith.constant 3.200000e+01 : f32
    %142 = vector.broadcast %cst_56 : f32 to vector<8x1xf32>
    %143 = arith.divf %141, %142 : vector<8x1xf32>
    %144 = vector.broadcast %143 : vector<8x1xf32> to vector<8x32xf32>
    %145 = arith.subf %139, %144 : vector<8x32xf32>
    %146 = arith.mulf %145, %145 : vector<8x32xf32>
    %cst_57 = arith.constant dense<0.000000e+00> : vector<8xf32>
    %147 = vector.multi_reduction <add>, %146, %cst_57 [1] : vector<8x32xf32> to vector<8xf32>
    %148 = vector.shape_cast %147 : vector<8xf32> to vector<8x1xf32>
    %cst_58 = arith.constant 3.200000e+01 : f32
    %149 = vector.broadcast %cst_58 : f32 to vector<8x1xf32>
    %150 = arith.divf %148, %149 : vector<8x1xf32>
    %151 = vector.broadcast %143 : vector<8x1xf32> to vector<8x32xf32>
    %152 = arith.subf %139, %151 : vector<8x32xf32>
    %cst_59 = arith.constant 9.99999996E-13 : f32
    %153 = vector.broadcast %cst_59 : f32 to vector<8x1xf32>
    %154 = arith.addf %150, %153 : vector<8x1xf32>
    %155 = math.rsqrt %154 : vector<8x1xf32>
    %156 = vector.broadcast %155 : vector<8x1xf32> to vector<8x32xf32>
    %157 = arith.mulf %152, %156 : vector<8x32xf32>
    %c0_60 = arith.constant 0 : index
    %c0_61 = arith.constant 0 : index
    %158 = vector.load %arg17[%c0_60, %c0_61] : memref<1x32xf32, #tpu.memory_space<vmem>>, vector<1x32xf32>
    %159 = vector.broadcast %158 : vector<1x32xf32> to vector<8x32xf32>
    %160 = arith.mulf %159, %157 : vector<8x32xf32>
    %c0_62 = arith.constant 0 : index
    %c0_63 = arith.constant 0 : index
    %161 = vector.load %arg18[%c0_62, %c0_63] : memref<1x32xf32, #tpu.memory_space<vmem>>, vector<1x32xf32>
    %162 = vector.broadcast %161 : vector<1x32xf32> to vector<8x32xf32>
    %163 = arith.addf %160, %162 : vector<8x32xf32>
    %c0_64 = arith.constant 0 : index
    %c0_65 = arith.constant 0 : index
    %c0_66 = arith.constant 0 : index
    %164 = vector.load %arg19[%c0_64, %c0_65, %c0_66] : memref<1x8x32xf32, #tpu.memory_space<vmem>>, vector<1x8x32xf32>
    %165 = vector.shape_cast %164 : vector<1x8x32xf32> to vector<8x32xf32>
    %166 = vector.shape_cast %163 : vector<8x32xf32> to vector<1x8x32xf32>
    tpu.vector_store %arg19[%c0_64, %c0_65, %c0_66], %166 {strides = array<i32>} : memref<1x8x32xf32, #tpu.memory_space<vmem>>, vector<1x8x32xf32>,
    return
  }
  func.func @transform_0(%arg0: i32, %arg1: i32) -> (i32, i32, i32) {
    %c0_i32 = arith.constant 0 : i32
    %c0_i32_0 = arith.constant 0 : i32
    return %arg0, %arg1, %c0_i32 : i32, i32, i32
  }
  func.func @transform_1(%arg0: i32, %arg1: i32) -> (i32, i32, i32) {
    %c0_i32 = arith.constant 0 : i32
    %c0_i32_0 = arith.constant 0 : i32
    %c0_i32_1 = arith.constant 0 : i32
    return %arg0, %c0_i32, %c0_i32_0 : i32, i32, i32
  }
  func.func @transform_2(%arg0: i32, %arg1: i32) -> (i32, i32, i32) {
    %c0_i32 = arith.constant 0 : i32
    %c0_i32_0 = arith.constant 0 : i32
    return %arg0, %arg1, %c0_i32 : i32, i32, i32
  }
  func.func @transform_3(%arg0: i32, %arg1: i32) -> (i32, i32) {
    %c0_i32 = arith.constant 0 : i32
    %c0_i32_0 = arith.constant 0 : i32
    %c0_i32_1 = arith.constant 0 : i32
    return %c0_i32, %c0_i32_0 : i32, i32
  }
  func.func @transform_4(%arg0: i32, %arg1: i32) -> (i32, i32) {
    %c0_i32 = arith.constant 0 : i32
    %c0_i32_0 = arith.constant 0 : i32
    %c0_i32_1 = arith.constant 0 : i32
    return %c0_i32, %c0_i32_0 : i32, i32
  }
  func.func @transform_5(%arg0: i32, %arg1: i32) -> (i32, i32) {
    %c0_i32 = arith.constant 0 : i32
    %c0_i32_0 = arith.constant 0 : i32
    %c0_i32_1 = arith.constant 0 : i32
    return %c0_i32, %c0_i32_0 : i32, i32
  }
  func.func @transform_6(%arg0: i32, %arg1: i32) -> (i32, i32) {
    %c0_i32 = arith.constant 0 : i32
    %c0_i32_0 = arith.constant 0 : i32
    %c0_i32_1 = arith.constant 0 : i32
    return %c0_i32, %c0_i32_0 : i32, i32
  }
  func.func @transform_7(%arg0: i32, %arg1: i32) -> (i32, i32) {
    %c0_i32 = arith.constant 0 : i32
    %c0_i32_0 = arith.constant 0 : i32
    %c0_i32_1 = arith.constant 0 : i32
    return %c0_i32, %c0_i32_0 : i32, i32
  }
  func.func @transform_8(%arg0: i32, %arg1: i32) -> (i32, i32) {
    %c0_i32 = arith.constant 0 : i32
    %c0_i32_0 = arith.constant 0 : i32
    %c0_i32_1 = arith.constant 0 : i32
    return %c0_i32, %c0_i32_0 : i32, i32
  }
  func.func @transform_9(%arg0: i32, %arg1: i32) -> (i32, i32) {
    %c0_i32 = arith.constant 0 : i32
    %c0_i32_0 = arith.constant 0 : i32
    %c0_i32_1 = arith.constant 0 : i32
    return %c0_i32, %c0_i32_0 : i32, i32
  }
  func.func @transform_10(%arg0: i32, %arg1: i32) -> (i32, i32) {
    %c0_i32 = arith.constant 0 : i32
    %c0_i32_0 = arith.constant 0 : i32
    %c0_i32_1 = arith.constant 0 : i32
    return %c0_i32, %c0_i32_0 : i32, i32
  }
  func.func @transform_11(%arg0: i32, %arg1: i32) -> (i32, i32) {
    %c0_i32 = arith.constant 0 : i32
    %c0_i32_0 = arith.constant 0 : i32
    %c0_i32_1 = arith.constant 0 : i32
    return %c0_i32, %c0_i32_0 : i32, i32
  }
  func.func @transform_12(%arg0: i32, %arg1: i32) -> (i32, i32) {
    %c0_i32 = arith.constant 0 : i32
    %c0_i32_0 = arith.constant 0 : i32
    %c0_i32_1 = arith.constant 0 : i32
    return %c0_i32, %c0_i32_0 : i32, i32
  }
  func.func @transform_13(%arg0: i32, %arg1: i32) -> (i32, i32) {
    %c0_i32 = arith.constant 0 : i32
    %c0_i32_0 = arith.constant 0 : i32
    %c0_i32_1 = arith.constant 0 : i32
    return %c0_i32, %c0_i32_0 : i32, i32
  }
  func.func @transform_14(%arg0: i32, %arg1: i32) -> (i32, i32) {
    %c0_i32 = arith.constant 0 : i32
    %c0_i32_0 = arith.constant 0 : i32
    %c0_i32_1 = arith.constant 0 : i32
    return %c0_i32, %c0_i32_0 : i32, i32
  }
  func.func @transform_15(%arg0: i32, %arg1: i32) -> (i32, i32) {
    %c0_i32 = arith.constant 0 : i32
    %c0_i32_0 = arith.constant 0 : i32
    %c0_i32_1 = arith.constant 0 : i32
    return %c0_i32, %c0_i32_0 : i32, i32
  }
  func.func @transform_16(%arg0: i32, %arg1: i32) -> (i32, i32) {
    %c0_i32 = arith.constant 0 : i32
    %c0_i32_0 = arith.constant 0 : i32
    %c0_i32_1 = arith.constant 0 : i32
    return %c0_i32, %c0_i32_0 : i32, i32
  }
  func.func @transform_17(%arg0: i32, %arg1: i32) -> (i32, i32, i32) {
    %c0_i32 = arith.constant 0 : i32
    %c0_i32_0 = arith.constant 0 : i32
    return %arg0, %arg1, %c0_i32 : i32, i32, i32
  }
}

</mosaic_0001>

<llo_original>
// kernel: tpu_custom_call.1
$region0: #{tpu_custom_call.1}
  #allocation0 [shape = 'u32[]', space=smem, size = 0x4, offset = 0x4, fixed_abs, tag = 'smem constant byte address 0x4 - core index']
  #allocation1 [shape = 'u32[144,128]{1,0:T(1,128)}', space=vmem, size = 0x12000, scoped, tag = 'internal scratch']
  %s0 = inlined_call_operand.hbm [shape: f32[2,8,32], index: 0, kind: input, shape index: {}]
  %s1 = inlined_call_operand.hbm [shape: f32[2,8,32], index: 1, kind: input, shape index: {}]
  %s2 = inlined_call_operand.hbm [shape: f32[2,8,1], index: 2, kind: input, shape index: {}]
  %s3 = inlined_call_operand.hbm [shape: bf16[32,32], index: 3, kind: input, shape index: {}]
  %s4 = inlined_call_operand.hbm [shape: f32[1,32], index: 4, kind: input, shape index: {}]
  %s5 = inlined_call_operand.hbm [shape: bf16[32,64], index: 5, kind: input, shape index: {}]
  %s6 = inlined_call_operand.hbm [shape: f32[1,64], index: 6, kind: input, shape index: {}]
  %s7 = inlined_call_operand.hbm [shape: bf16[32,32], index: 7, kind: input, shape index: {}]
  %s8 = inlined_call_operand.hbm [shape: f32[1,32], index: 8, kind: input, shape index: {}]
  %s9 = inlined_call_operand.hbm [shape: bf16[32,128], index: 9, kind: input, shape index: {}]
  %s10 = inlined_call_operand.hbm [shape: f32[1,128], index: 10, kind: input, shape index: {}]
  %s11 = inlined_call_operand.hbm [shape: bf16[128,32], index: 11, kind: input, shape index: {}]
  %s12 = inlined_call_operand.hbm [shape: f32[1,32], index: 12, kind: input, shape index: {}]
  %s13 = inlined_call_operand.hbm [shape: f32[1,32], index: 13, kind: input, shape index: {}]
  %s14 = inlined_call_operand.hbm [shape: f32[1,32], index: 14, kind: input, shape index: {}]
  %s15 = inlined_call_operand.hbm [shape: f32[1,32], index: 15, kind: input, shape index: {}]
  %s16 = inlined_call_operand.hbm [shape: f32[1,32], index: 16, kind: input, shape index: {}]
  %s17 = inlined_call_operand.hbm [shape: f32[2,8,32], index: 17, kind: output, shape index: {}]
  %s18 = sld [smem:[#allocation0]]
  $region169: #{tpu_custom_call.1} parent=0
    _
  %s20 = ssub.s32 1, %s18
  %s21 = scalar_select 0, %s20, %s18
  $region1: #{tpu_custom_call.1} parent=0
    #allocation2 [shape = 'u8[8192]{0}', space=vmem, size = 0x2000, scoped, tag = 'input window, operand 0']
    #allocation3 [shape = 's32[2]{0}', space=sflag, size = 0x8, scoped, tag = 'scoped memory for tpu_custom_call.1']
    #allocation4 [shape = 's32[2]{0}', space=sflag, size = 0x8, scoped, tag = 'scoped memory for tpu_custom_call.1']
    #allocation5 [shape = 'u8[8192]{0}', space=vmem, size = 0x2000, scoped, tag = 'input window, operand 1']
    #allocation6 [shape = 's32[2]{0}', space=sflag, size = 0x8, scoped, tag = 'scoped memory for tpu_custom_call.1']
    #allocation7 [shape = 'u8[8192]{0}', space=vmem, size = 0x2000, scoped, tag = 'input window, operand 2']
    #allocation8 [shape = 'u8[8192]{0}', space=vmem, size = 0x2000, scoped, tag = 'input window, operand 3, single buffered']
    #allocation9 [shape = 's32[1]{0}', space=sflag, size = 0x4, scoped, tag = 'scoped memory for tpu_custom_call.1']
    #allocation10 [shape = 'u8[512]{0}', space=vmem, size = 0x400, scoped, tag = 'input window, operand 4, single buffered']
    #allocation11 [shape = 'u8[8192]{0}', space=vmem, size = 0x2000, scoped, tag = 'input window, operand 5, single buffered']
    #allocation12 [shape = 's32[1]{0}', space=sflag, size = 0x4, scoped, tag = 'scoped memory for tpu_custom_call.1']
    #allocation13 [shape = 'u8[512]{0}', space=vmem, size = 0x400, scoped, tag = 'input window, operand 6, single buffered']
    #allocation14 [shape = 'u8[8192]{0}', space=vmem, size = 0x2000, scoped, tag = 'input window, operand 7, single buffered']
    #allocation15 [shape = 's32[1]{0}', space=sflag, size = 0x4, scoped, tag = 'scoped memory for tpu_custom_call.1']
    #allocation16 [shape = 'u8[512]{0}', space=vmem, size = 0x400, scoped, tag = 'input window, operand 8, single buffered']
    #allocation17 [shape = 'u8[8192]{0}', space=vmem, size = 0x2000, scoped, tag = 'input window, operand 9, single buffered']
    #allocation18 [shape = 's32[1]{0}', space=sflag, size = 0x4, scoped, tag = 'scoped memory for tpu_custom_call.1']
    #allocation19 [shape = 'u8[512]{0}', space=vmem, size = 0x400, scoped, tag = 'input window, operand 10, single buffered']
    #allocation20 [shape = 'u8[32768]{0}', space=vmem, size = 0x8000, scoped, tag = 'input window, operand 11, single buffered']
    #allocation21 [shape = 's32[1]{0}', space=sflag, size = 0x4, scoped, tag = 'scoped memory for tpu_custom_call.1']
    #allocation22 [shape = 'u8[512]{0}', space=vmem, size = 0x400, scoped, tag = 'input window, operand 12, single buffered']
    #allocation23 [shape = 'u8[512]{0}', space=vmem, size = 0x400, scoped, tag = 'input window, operand 13, single buffered']
    #allocation24 [shape = 's32[1]{0}', space=sflag, size = 0x4, scoped, tag = 'scoped memory for tpu_custom_call.1']
    #allocation25 [shape = 'u8[512]{0}', space=vmem, size = 0x400, scoped, tag = 'input window, operand 14, single buffered']
    #allocation26 [shape = 'u8[512]{0}', space=vmem, size = 0x400, scoped, tag = 'input window, operand 15, single buffered']
    #allocation27 [shape = 's32[1]{0}', space=sflag, size = 0x4, scoped, tag = 'scoped memory for tpu_custom_call.1']
    #allocation28 [shape = 'u8[512]{0}', space=vmem, size = 0x400, scoped, tag = 'input window, operand 16, single buffered']
    #allocation29 [shape = 'u8[8192]{0}', space=vmem, size = 0x2000, scoped, tag = 'output window, operand 0']
    %22 = vsyncpa [#allocation3], 0
    %s23 = scalar_lea.sflag [#allocation3], 1
    %24 = vsyncpa %s23, 0
    %25 = vsyncpa [#allocation6], 0
    %s26 = scalar_lea.sflag [#allocation6], 1
    %27 = vsyncpa %s26, 0
    %28 = vsyncpa [#allocation9], 0
    %29 = vsyncpa [#allocation12], 0
    %30 = vsyncpa [#allocation15], 0
    %31 = vsyncpa [#allocation18], 0
    %32 = vsyncpa [#allocation21], 0
    %33 = vsyncpa [#allocation24], 0
    %34 = vsyncpa [#allocation27], 0
    %35 = vsyncpa [#allocation4], 0
    %s36 = scalar_lea.sflag [#allocation4], 1
    %37 = vsyncpa %s36, 0
    loop: start=0, step=1, limit=4
    $region2: #{tpu_custom_call.1} parent=1 // loop_pre_header
      _
    $region3: #{tpu_custom_call.1} parent=1 // loop_header
      %s39 = sphi 0, %s43
      %p40 = scmp.ge.s32.totalorder %s39, 4
      %s46 = sphi 0, %s58
      %s47 = sphi 0, %s54
      %s48 = sphi 0, %s46
      %s49 = sphi 0, %s47
      %s50 = sphi 0, %s48
      %s51 = sphi 0, %s49
      %s63 = sphi 0, %s65
      %s66 = sphi 0, %s63
      %s67 = sphi 0, %s66
      %s83 = sphi 0, %s67
      %s89 = sphi 0, %s91
      %s92 = sphi 0, %s89
      %s93 = sphi 0, %s92
      %s109 = sphi 0, %s93
      %s117 = sphi 0, %s119
      %s120 = sphi 0, %s117
      %s121 = sphi 0, %s120
      %s137 = sphi 0, %s121
      %s141 = sphi 0, %s141
      %s143 = sphi 0, %s141
      %s144 = sphi 0, %s143
      %s158 = sphi 0, %s144
      %s162 = sphi 0, %s162
      %s164 = sphi 0, %s162
      %s165 = sphi 0, %s164
      %s179 = sphi 0, %s165
      %s183 = sphi 0, %s183
      %s185 = sphi 0, %s183
      %s186 = sphi 0, %s185
      %s200 = sphi 0, %s186
      %s204 = sphi 0, %s204
      %s206 = sphi 0, %s204
      %s207 = sphi 0, %s206
      %s221 = sphi 0, %s207
      %s225 = sphi 0, %s225
      %s227 = sphi 0, %s225
      %s228 = sphi 0, %s227
      %s242 = sphi 0, %s228
      %s246 = sphi 0, %s246
      %s248 = sphi 0, %s246
      %s249 = sphi 0, %s248
      %s263 = sphi 0, %s249
      %s267 = sphi 0, %s267
      %s269 = sphi 0, %s267
      %s270 = sphi 0, %s269
      %s284 = sphi 0, %s270
      %s288 = sphi 0, %s288
      %s290 = sphi 0, %s288
      %s291 = sphi 0, %s290
      %s305 = sphi 0, %s291
      %s309 = sphi 0, %s309
      %s311 = sphi 0, %s309
      %s312 = sphi 0, %s311
      %s326 = sphi 0, %s312
      %s330 = sphi 0, %s330
      %s332 = sphi 0, %s330
      %s333 = sphi 0, %s332
      %s347 = sphi 0, %s333
      %s351 = sphi 0, %s351
      %s353 = sphi 0, %s351
      %s354 = sphi 0, %s353
      %s368 = sphi 0, %s354
      %s372 = sphi 0, %s372
      %s374 = sphi 0, %s372
      %s375 = sphi 0, %s374
      %s389 = sphi 0, %s375
      %s393 = sphi 0, %s393
      %s395 = sphi 0, %s393
      %s396 = sphi 0, %s395
      %s410 = sphi 0, %s396
      %s414 = sphi 0, %s414
      %s416 = sphi 0, %s414
      %s417 = sphi 0, %s416
      %s431 = sphi 0, %s417
      %s439 = sphi 0, %s441
      %s442 = sphi 0, %s439
      %s443 = sphi 0, %s442
      %s459 = sphi 0, %s443
    $region4: #{tpu_custom_call.1} parent=1 // loop_header_branch
      %42 = sbr.rel (%p40) target = $region8
    $region5: #{tpu_custom_call.1} parent=1 // loop_body
      %s44 = ssub.s32 %s39, 1
      %s45 = ssub.s32 %s39, 2
      %s52 = sadd.s32 1, %s47
      %p53 = scmp.ge.s32.totalorder %s52, 1
      %s54 = scalar_select %p53, 0, %s52
      %s55 = sadd.s32 1, %s46
      %s56 = scalar_select %p53, %s55, %s46
      %p57 = scmp.ge.s32.totalorder %s56, 2
      %s58 = scalar_select %p57, 0, %s56
      %s59 = ssub.s32 %s46, %s58
      %s60 = ssub.s32 %s47, %s54
      %s61 = sor.u32 %s59, %s60
      %p62 = scmp.eq.s32.totalorder %s61, 0
      %s64 = sadd.s32 %s63, 1
      %s65 = scalar_select %p62, %s63, %s64
      %p68 = pneg %p62
      %p69 = scmp.eq.s32.totalorder %s39, 1
      %p70 = por %p68, %p69
      %p71 = scmp.ne.s32.totalorder %s63, %s66
      %p72 = scmp.eq.s32.totalorder %s39, 0
      %p73 = por %p71, %p72
      %p74 = scmp.ne.s32.totalorder %s63, %s66
      %p75 = scmp.eq.s32.totalorder %s44, 1
      %p76 = por %p74, %p75
      %p77 = scmp.ne.s32.totalorder %s66, %s67
      %p78 = scmp.eq.s32.totalorder %s44, 0
      %p79 = por %p77, %p78
      %p80 = scmp.ne.s32.totalorder %s66, %s67
      %p81 = scmp.eq.s32.totalorder %s45, 1
      %p82 = por %p80, %p81
      %p84 = scmp.ne.s32.totalorder %s67, %s83
      %p85 = scmp.eq.s32.totalorder %s45, 0
      %p86 = por %p84, %p85
      %s87 = ssub.s32 %s46, %s58
      %p88 = scmp.eq.s32.totalorder %s87, 0
      %s90 = sadd.s32 %s89, 1
      %s91 = scalar_select %p88, %s89, %s90
      %p94 = pneg %p88
      %p95 = scmp.eq.s32.totalorder %s39, 1
      %p96 = por %p94, %p95
      %p97 = scmp.ne.s32.totalorder %s89, %s92
      %p98 = scmp.eq.s32.totalorder %s39, 0
      %p99 = por %p97, %p98
      %p100 = scmp.ne.s32.totalorder %s89, %s92
      %p101 = scmp.eq.s32.totalorder %s44, 1
      %p102 = por %p100, %p101
      %p103 = scmp.ne.s32.totalorder %s92, %s93
      %p104 = scmp.eq.s32.totalorder %s44, 0
      %p105 = por %p103, %p104
      %p106 = scmp.ne.s32.totalorder %s92, %s93
      %p107 = scmp.eq.s32.totalorder %s45, 1
      %p108 = por %p106, %p107
      %p110 = scmp.ne.s32.totalorder %s93, %s109
      %p111 = scmp.eq.s32.totalorder %s45, 0
      %p112 = por %p110, %p111
      %s113 = ssub.s32 %s46, %s58
      %s114 = ssub.s32 %s47, %s54
      %s115 = sor.u32 %s113, %s114
      %p116 = scmp.eq.s32.totalorder %s115, 0
      %s118 = sadd.s32 %s117, 1
      %s119 = scalar_select %p116, %s117, %s118
      %p122 = pneg %p116
      %p123 = scmp.eq.s32.totalorder %s39, 1
      %p124 = por %p122, %p123
      %p125 = scmp.ne.s32.totalorder %s117, %s120
      %p126 = scmp.eq.s32.totalorder %s39, 0
      %p127 = por %p125, %p126
      %p128 = scmp.ne.s32.totalorder %s117, %s120
      %p129 = scmp.eq.s32.totalorder %s44, 1
      %p130 = por %p128, %p129
      %p131 = scmp.ne.s32.totalorder %s120, %s121
      %p132 = scmp.eq.s32.totalorder %s44, 0
      %p133 = por %p131, %p132
      %p134 = scmp.ne.s32.totalorder %s120, %s121
      %p135 = scmp.eq.s32.totalorder %s45, 1
      %p136 = por %p134, %p135
      %p138 = scmp.ne.s32.totalorder %s121, %s137
      %p139 = scmp.eq.s32.totalorder %s45, 0
      %p140 = por %p138, %p139
      %s142 = sadd.s32 %s141, 1
      %p145 = scmp.eq.s32.totalorder %s39, 1
      %p146 = scmp.ne.s32.totalorder %s141, %s143
      %p147 = scmp.eq.s32.totalorder %s39, 0
      %p148 = por %p146, %p147
      %p149 = scmp.ne.s32.totalorder %s141, %s143
      %p150 = scmp.eq.s32.totalorder %s44, 1
      %p151 = por %p149, %p150
      %p152 = scmp.ne.s32.totalorder %s143, %s144
      %p153 = scmp.eq.s32.totalorder %s44, 0
      %p154 = por %p152, %p153
      %p155 = scmp.ne.s32.totalorder %s143, %s144
      %p156 = scmp.eq.s32.totalorder %s45, 1
      %p157 = por %p155, %p156
      %p159 = scmp.ne.s32.totalorder %s144, %s158
      %p160 = scmp.eq.s32.totalorder %s45, 0
      %p161 = por %p159, %p160
      %s163 = sadd.s32 %s162, 1
      %p166 = scmp.eq.s32.totalorder %s39, 1
      %p167 = scmp.ne.s32.totalorder %s162, %s164
      %p168 = scmp.eq.s32.totalorder %s39, 0
      %p169 = por %p167, %p168
      %p170 = scmp.ne.s32.totalorder %s162, %s164
      %p171 = scmp.eq.s32.totalorder %s44, 1
      %p172 = por %p170, %p171
      %p173 = scmp.ne.s32.totalorder %s164, %s165
      %p174 = scmp.eq.s32.totalorder %s44, 0
      %p175 = por %p173, %p174
      %p176 = scmp.ne.s32.totalorder %s164, %s165
      %p177 = scmp.eq.s32.totalorder %s45, 1
      %p178 = por %p176, %p177
      %p180 = scmp.ne.s32.totalorder %s165, %s179
      %p181 = scmp.eq.s32.totalorder %s45, 0
      %p182 = por %p180, %p181
      %s184 = sadd.s32 %s183, 1
      %p187 = scmp.eq.s32.totalorder %s39, 1
      %p188 = scmp.ne.s32.totalorder %s183, %s185
      %p189 = scmp.eq.s32.totalorder %s39, 0
      %p190 = por %p188, %p189
      %p191 = scmp.ne.s32.totalorder %s183, %s185
      %p192 = scmp.eq.s32.totalorder %s44, 1
      %p193 = por %p191, %p192
      %p194 = scmp.ne.s32.totalorder %s185, %s186
      %p195 = scmp.eq.s32.totalorder %s44, 0
      %p196 = por %p194, %p195
      %p197 = scmp.ne.s32.totalorder %s185, %s186
      %p198 = scmp.eq.s32.totalorder %s45, 1
      %p199 = por %p197, %p198
      %p201 = scmp.ne.s32.totalorder %s186, %s200
      %p202 = scmp.eq.s32.totalorder %s45, 0
      %p203 = por %p201, %p202
      %s205 = sadd.s32 %s204, 1
      %p208 = scmp.eq.s32.totalorder %s39, 1
      %p209 = scmp.ne.s32.totalorder %s204, %s206
      %p210 = scmp.eq.s32.totalorder %s39, 0
      %p211 = por %p209, %p210
      %p212 = scmp.ne.s32.totalorder %s204, %s206
      %p213 = scmp.eq.s32.totalorder %s44, 1
      %p214 = por %p212, %p213
      %p215 = scmp.ne.s32.totalorder %s206, %s207
      %p216 = scmp.eq.s32.totalorder %s44, 0
      %p217 = por %p215, %p216
      %p218 = scmp.ne.s32.totalorder %s206, %s207
      %p219 = scmp.eq.s32.totalorder %s45, 1
      %p220 = por %p218, %p219
      %p222 = scmp.ne.s32.totalorder %s207, %s221
      %p223 = scmp.eq.s32.totalorder %s45, 0
      %p224 = por %p222, %p223
      %s226 = sadd.s32 %s225, 1
      %p229 = scmp.eq.s32.totalorder %s39, 1
      %p230 = scmp.ne.s32.totalorder %s225, %s227
      %p231 = scmp.eq.s32.totalorder %s39, 0
      %p232 = por %p230, %p231
      %p233 = scmp.ne.s32.totalorder %s225, %s227
      %p234 = scmp.eq.s32.totalorder %s44, 1
      %p235 = por %p233, %p234
      %p236 = scmp.ne.s32.totalorder %s227, %s228
      %p237 = scmp.eq.s32.totalorder %s44, 0
      %p238 = por %p236, %p237
      %p239 = scmp.ne.s32.totalorder %s227, %s228
      %p240 = scmp.eq.s32.totalorder %s45, 1
      %p241 = por %p239, %p240
      %p243 = scmp.ne.s32.totalorder %s228, %s242
      %p244 = scmp.eq.s32.totalorder %s45, 0
      %p245 = por %p243, %p244
      %s247 = sadd.s32 %s246, 1
      %p250 = scmp.eq.s32.totalorder %s39, 1
      %p251 = scmp.ne.s32.totalorder %s246, %s248
      %p252 = scmp.eq.s32.totalorder %s39, 0
      %p253 = por %p251, %p252
      %p254 = scmp.ne.s32.totalorder %s246, %s248
      %p255 = scmp.eq.s32.totalorder %s44, 1
      %p256 = por %p254, %p255
      %p257 = scmp.ne.s32.totalorder %s248, %s249
      %p258 = scmp.eq.s32.totalorder %s44, 0
      %p259 = por %p257, %p258
      %p260 = scmp.ne.s32.totalorder %s248, %s249
      %p261 = scmp.eq.s32.totalorder %s45, 1
      %p262 = por %p260, %p261
      %p264 = scmp.ne.s32.totalorder %s249, %s263
      %p265 = scmp.eq.s32.totalorder %s45, 0
      %p266 = por %p264, %p265
      %s268 = sadd.s32 %s267, 1
      %p271 = scmp.eq.s32.totalorder %s39, 1
      %p272 = scmp.ne.s32.totalorder %s267, %s269
      %p273 = scmp.eq.s32.totalorder %s39, 0
      %p274 = por %p272, %p273
      %p275 = scmp.ne.s32.totalorder %s267, %s269
      %p276 = scmp.eq.s32.totalorder %s44, 1
      %p277 = por %p275, %p276
      %p278 = scmp.ne.s32.totalorder %s269, %s270
      %p279 = scmp.eq.s32.totalorder %s44, 0
      %p280 = por %p278, %p279
      %p281 = scmp.ne.s32.totalorder %s269, %s270
      %p282 = scmp.eq.s32.totalorder %s45, 1
      %p283 = por %p281, %p282
      %p285 = scmp.ne.s32.totalorder %s270, %s284
      %p286 = scmp.eq.s32.totalorder %s45, 0
      %p287 = por %p285, %p286
      %s289 = sadd.s32 %s288, 1
      %p292 = scmp.eq.s32.totalorder %s39, 1
      %p293 = scmp.ne.s32.totalorder %s288, %s290
      %p294 = scmp.eq.s32.totalorder %s39, 0
      %p295 = por %p293, %p294
      %p296 = scmp.ne.s32.totalorder %s288, %s290
      %p297 = scmp.eq.s32.totalorder %s44, 1
      %p298 = por %p296, %p297
      %p299 = scmp.ne.s32.totalorder %s290, %s291
      %p300 = scmp.eq.s32.totalorder %s44, 0
      %p301 = por %p299, %p300
      %p302 = scmp.ne.s32.totalorder %s290, %s291
      %p303 = scmp.eq.s32.totalorder %s45, 1
      %p304 = por %p302, %p303
      %p306 = scmp.ne.s32.totalorder %s291, %s305
      %p307 = scmp.eq.s32.totalorder %s45, 0
      %p308 = por %p306, %p307
      %s310 = sadd.s32 %s309, 1
      %p313 = scmp.eq.s32.totalorder %s39, 1
      %p314 = scmp.ne.s32.totalorder %s309, %s311
      %p315 = scmp.eq.s32.totalorder %s39, 0
      %p316 = por %p314, %p315
      %p317 = scmp.ne.s32.totalorder %s309, %s311
      %p318 = scmp.eq.s32.totalorder %s44, 1
      %p319 = por %p317, %p318
      %p320 = scmp.ne.s32.totalorder %s311, %s312
      %p321 = scmp.eq.s32.totalorder %s44, 0
      %p322 = por %p320, %p321
      %p323 = scmp.ne.s32.totalorder %s311, %s312
      %p324 = scmp.eq.s32.totalorder %s45, 1
      %p325 = por %p323, %p324
      %p327 = scmp.ne.s32.totalorder %s312, %s326
      %p328 = scmp.eq.s32.totalorder %s45, 0
      %p329 = por %p327, %p328
      %s331 = sadd.s32 %s330, 1
      %p334 = scmp.eq.s32.totalorder %s39, 1
      %p335 = scmp.ne.s32.totalorder %s330, %s332
      %p336 = scmp.eq.s32.totalorder %s39, 0
      %p337 = por %p335, %p336
      %p338 = scmp.ne.s32.totalorder %s330, %s332
      %p339 = scmp.eq.s32.totalorder %s44, 1
      %p340 = por %p338, %p339
      %p341 = scmp.ne.s32.totalorder %s332, %s333
      %p342 = scmp.eq.s32.totalorder %s44, 0
      %p343 = por %p341, %p342
      %p344 = scmp.ne.s32.totalorder %s332, %s333
      %p345 = scmp.eq.s32.totalorder %s45, 1
      %p346 = por %p344, %p345
      %p348 = scmp.ne.s32.totalorder %s333, %s347
      %p349 = scmp.eq.s32.totalorder %s45, 0
      %p350 = por %p348, %p349
      %s352 = sadd.s32 %s351, 1
      %p355 = scmp.eq.s32.totalorder %s39, 1
      %p356 = scmp.ne.s32.totalorder %s351, %s353
      %p357 = scmp.eq.s32.totalorder %s39, 0
      %p358 = por %p356, %p357
      %p359 = scmp.ne.s32.totalorder %s351, %s353
      %p360 = scmp.eq.s32.totalorder %s44, 1
      %p361 = por %p359, %p360
      %p362 = scmp.ne.s32.totalorder %s353, %s354
      %p363 = scmp.eq.s32.totalorder %s44, 0
      %p364 = por %p362, %p363
      %p365 = scmp.ne.s32.totalorder %s353, %s354
      %p366 = scmp.eq.s32.totalorder %s45, 1
      %p367 = por %p365, %p366
      %p369 = scmp.ne.s32.totalorder %s354, %s368
      %p370 = scmp.eq.s32.totalorder %s45, 0
      %p371 = por %p369, %p370
      %s373 = sadd.s32 %s372, 1
      %p376 = scmp.eq.s32.totalorder %s39, 1
      %p377 = scmp.ne.s32.totalorder %s372, %s374
      %p378 = scmp.eq.s32.totalorder %s39, 0
      %p379 = por %p377, %p378
      %p380 = scmp.ne.s32.totalorder %s372, %s374
      %p381 = scmp.eq.s32.totalorder %s44, 1
      %p382 = por %p380, %p381
      %p383 = scmp.ne.s32.totalorder %s374, %s375
      %p384 = scmp.eq.s32.totalorder %s44, 0
      %p385 = por %p383, %p384
      %p386 = scmp.ne.s32.totalorder %s374, %s375
      %p387 = scmp.eq.s32.totalorder %s45, 1
      %p388 = por %p386, %p387
      %p390 = scmp.ne.s32.totalorder %s375, %s389
      %p391 = scmp.eq.s32.totalorder %s45, 0
      %p392 = por %p390, %p391
      %s394 = sadd.s32 %s393, 1
      %p397 = scmp.eq.s32.totalorder %s39, 1
      %p398 = scmp.ne.s32.totalorder %s393, %s395
      %p399 = scmp.eq.s32.totalorder %s39, 0
      %p400 = por %p398, %p399
      %p401 = scmp.ne.s32.totalorder %s393, %s395
      %p402 = scmp.eq.s32.totalorder %s44, 1
      %p403 = por %p401, %p402
      %p404 = scmp.ne.s32.totalorder %s395, %s396
      %p405 = scmp.eq.s32.totalorder %s44, 0
      %p406 = por %p404, %p405
      %p407 = scmp.ne.s32.totalorder %s395, %s396
      %p408 = scmp.eq.s32.totalorder %s45, 1
      %p409 = por %p407, %p408
      %p411 = scmp.ne.s32.totalorder %s396, %s410
      %p412 = scmp.eq.s32.totalorder %s45, 0
      %p413 = por %p411, %p412
      %s415 = sadd.s32 %s414, 1
      %p418 = scmp.eq.s32.totalorder %s39, 1
      %p419 = scmp.ne.s32.totalorder %s414, %s416
      %p420 = scmp.eq.s32.totalorder %s39, 0
      %p421 = por %p419, %p420
      %p422 = scmp.ne.s32.totalorder %s414, %s416
      %p423 = scmp.eq.s32.totalorder %s44, 1
      %p424 = por %p422, %p423
      %p425 = scmp.ne.s32.totalorder %s416, %s417
      %p426 = scmp.eq.s32.totalorder %s44, 0
      %p427 = por %p425, %p426
      %p428 = scmp.ne.s32.totalorder %s416, %s417
      %p429 = scmp.eq.s32.totalorder %s45, 1
      %p430 = por %p428, %p429
      %p432 = scmp.ne.s32.totalorder %s417, %s431
      %p433 = scmp.eq.s32.totalorder %s45, 0
      %p434 = por %p432, %p433
      %s435 = ssub.s32 %s46, %s58
      %s436 = ssub.s32 %s47, %s54
      %s437 = sor.u32 %s435, %s436
      %p438 = scmp.eq.s32.totalorder %s437, 0
      %s440 = sadd.s32 %s439, 1
      %s441 = scalar_select %p438, %s439, %s440
      %p444 = pneg %p438
      %p445 = scmp.eq.s32.totalorder %s39, 1
      %p446 = por %p444, %p445
      %p447 = scmp.ne.s32.totalorder %s439, %s442
      %p448 = scmp.eq.s32.totalorder %s39, 0
      %p449 = por %p447, %p448
      %p450 = scmp.ne.s32.totalorder %s439, %s442
      %p451 = scmp.eq.s32.totalorder %s44, 1
      %p452 = por %p450, %p451
      %p453 = scmp.ne.s32.totalorder %s442, %s443
      %p454 = scmp.eq.s32.totalorder %s44, 0
      %p455 = por %p453, %p454
      %p456 = scmp.ne.s32.totalorder %s442, %s443
      %p457 = scmp.eq.s32.totalorder %s45, 1
      %p458 = por %p456, %p457
      %p460 = scmp.ne.s32.totalorder %s443, %s459
      %p461 = scmp.eq.s32.totalorder %s45, 0
      %p462 = por %p460, %p461
      %p463 = scmp.le.s32.totalorder 1, %s39
      %p464 = scmp.lt.s32.totalorder %s39, 3
      %p465 = pnand %p463, %p464
      %p466 = pneg %p465
      // Predicated region
      $region9: #{tpu_custom_call.1} parent=5 // pred_check
        _
      $region10: #{tpu_custom_call.1} parent=5 // pred_check_branch
        %468 = sbr.rel (%p465) target = $region12
      $region11: #{tpu_custom_call.1} parent=5 // pred_region
        %s469 = ssub.s32 %s39, 1
        // Predicated region
        $region13: #{tpu_custom_call.1} parent=11 // pred_check
          %p470 = pneg %p154
        $region14: #{tpu_custom_call.1} parent=11 // pred_check_branch
          %472 = sbr.rel (%p470) target = $region16
        $region15: #{tpu_custom_call.1} parent=11 // pred_region
          %s474 = ssub.s32 256, 256
          %475 = vsyncadd [#allocation9], %s474
          %s476 = sshll.u32 [#allocation8], 4
          %s477 = int_to_ptr.vmem [resolvable:$true] %s476
          %482 = dma.hbm_to_vmem [thread:$0]  %s3, 256, %s477, [#allocation9], 64, 64, 4
        $region16: #{tpu_custom_call.1} parent=11 // pred_fallthru
          _
        // Predicated region
        $region17: #{tpu_custom_call.1} parent=11 // pred_check
          %p483 = pneg %p175
        $region18: #{tpu_custom_call.1} parent=11 // pred_check_branch
          %485 = sbr.rel (%p483) target = $region20
        $region19: #{tpu_custom_call.1} parent=11 // pred_region
          %s487 = ssub.s32 16, 16
          %488 = vsyncadd [#allocation9], %s487
          %s490 = sshll.u32 [#allocation10], 4
          %s491 = int_to_ptr.vmem [resolvable:$true] %s490
          %493 = dma.hbm_to_vmem [thread:$0]  %s4, 16, %s491, [#allocation9]
        $region20: #{tpu_custom_call.1} parent=11 // pred_fallthru
          _
        // Predicated region
        $region21: #{tpu_custom_call.1} parent=11 // pred_check
          %p494 = pneg %p196
        $region22: #{tpu_custom_call.1} parent=11 // pred_check_branch
          %496 = sbr.rel (%p494) target = $region24
        $region23: #{tpu_custom_call.1} parent=11 // pred_region
          %s498 = ssub.s32 256, 256
          %499 = vsyncadd [#allocation12], %s498
          %s500 = sshll.u32 [#allocation11], 4
          %s501 = int_to_ptr.vmem [resolvable:$true] %s500
          %506 = dma.hbm_to_vmem [thread:$0]  %s5, 256, %s501, [#allocation12], 64, 64, 4
        $region24: #{tpu_custom_call.1} parent=11 // pred_fallthru
          _
        // Predicated region
        $region25: #{tpu_custom_call.1} parent=11 // pred_check
          %p507 = pneg %p217
        $region26: #{tpu_custom_call.1} parent=11 // pred_check_branch
          %509 = sbr.rel (%p507) target = $region28
        $region27: #{tpu_custom_call.1} parent=11 // pred_region
          %s511 = ssub.s32 16, 16
          %512 = vsyncadd [#allocation12], %s511
          %s514 = sshll.u32 [#allocation13], 4
          %s515 = int_to_ptr.vmem [resolvable:$true] %s514
          %517 = dma.hbm_to_vmem [thread:$0]  %s6, 16, %s515, [#allocation12]
        $region28: #{tpu_custom_call.1} parent=11 // pred_fallthru
          _
        // Predicated region
        $region29: #{tpu_custom_call.1} parent=11 // pred_check
          %p518 = pneg %p238
        $region30: #{tpu_custom_call.1} parent=11 // pred_check_branch
          %520 = sbr.rel (%p518) target = $region32
        $region31: #{tpu_custom_call.1} parent=11 // pred_region
          %s522 = ssub.s32 256, 256
          %523 = vsyncadd [#allocation15], %s522
          %s524 = sshll.u32 [#allocation14], 4
          %s525 = int_to_ptr.vmem [resolvable:$true] %s524
          %530 = dma.hbm_to_vmem [thread:$0]  %s7, 256, %s525, [#allocation15], 64, 64, 4
        $region32: #{tpu_custom_call.1} parent=11 // pred_fallthru
          _
        // Predicated region
        $region33: #{tpu_custom_call.1} parent=11 // pred_check
          %p531 = pneg %p259
        $region34: #{tpu_custom_call.1} parent=11 // pred_check_branch
          %533 = sbr.rel (%p531) target = $region36
        $region35: #{tpu_custom_call.1} parent=11 // pred_region
          %s535 = ssub.s32 16, 16
          %536 = vsyncadd [#allocation15], %s535
          %s538 = sshll.u32 [#allocation16], 4
          %s539 = int_to_ptr.vmem [resolvable:$true] %s538
          %541 = dma.hbm_to_vmem [thread:$0]  %s8, 16, %s539, [#allocation15]
        $region36: #{tpu_custom_call.1} parent=11 // pred_fallthru
          _
        // Predicated region
        $region37: #{tpu_custom_call.1} parent=11 // pred_check
          %p542 = pneg %p280
        $region38: #{tpu_custom_call.1} parent=11 // pred_check_branch
          %544 = sbr.rel (%p542) target = $region40
        $region39: #{tpu_custom_call.1} parent=11 // pred_region
          %s546 = ssub.s32 256, 256
          %547 = vsyncadd [#allocation18], %s546
          %s548 = sshll.u32 [#allocation17], 4
          %s549 = int_to_ptr.vmem [resolvable:$true] %s548
          %554 = dma.hbm_to_vmem [thread:$0]  %s9, 256, %s549, [#allocation18], 64, 64, 4
        $region40: #{tpu_custom_call.1} parent=11 // pred_fallthru
          _
        // Predicated region
        $region41: #{tpu_custom_call.1} parent=11 // pred_check
          %p555 = pneg %p301
        $region42: #{tpu_custom_call.1} parent=11 // pred_check_branch
          %557 = sbr.rel (%p555) target = $region44
        $region43: #{tpu_custom_call.1} parent=11 // pred_region
          %s559 = ssub.s32 16, 16
          %560 = vsyncadd [#allocation18], %s559
          %s562 = sshll.u32 [#allocation19], 4
          %s563 = int_to_ptr.vmem [resolvable:$true] %s562
          %565 = dma.hbm_to_vmem [thread:$0]  %s10, 16, %s563, [#allocation18]
        $region44: #{tpu_custom_call.1} parent=11 // pred_fallthru
          _
        // Predicated region
        $region45: #{tpu_custom_call.1} parent=11 // pred_check
          %p566 = pneg %p322
        $region46: #{tpu_custom_call.1} parent=11 // pred_check_branch
          %568 = sbr.rel (%p566) target = $region48
        $region47: #{tpu_custom_call.1} parent=11 // pred_region
          %s570 = ssub.s32 1024, 1024
          %571 = vsyncadd [#allocation21], %s570
          %s572 = sshll.u32 [#allocation20], 4
          %s573 = int_to_ptr.vmem [resolvable:$true] %s572
          %578 = dma.hbm_to_vmem [thread:$0]  %s11, 1024, %s573, [#allocation21], 64, 64, 4
        $region48: #{tpu_custom_call.1} parent=11 // pred_fallthru
          _
        // Predicated region
        $region49: #{tpu_custom_call.1} parent=11 // pred_check
          %p579 = pneg %p343
        $region50: #{tpu_custom_call.1} parent=11 // pred_check_branch
          %581 = sbr.rel (%p579) target = $region52
        $region51: #{tpu_custom_call.1} parent=11 // pred_region
          %s583 = ssub.s32 16, 16
          %584 = vsyncadd [#allocation21], %s583
          %s586 = sshll.u32 [#allocation22], 4
          %s587 = int_to_ptr.vmem [resolvable:$true] %s586
          %589 = dma.hbm_to_vmem [thread:$0]  %s12, 16, %s587, [#allocation21]
        $region52: #{tpu_custom_call.1} parent=11 // pred_fallthru
          _
        // Predicated region
        $region53: #{tpu_custom_call.1} parent=11 // pred_check
          %p590 = pneg %p364
        $region54: #{tpu_custom_call.1} parent=11 // pred_check_branch
          %592 = sbr.rel (%p590) target = $region56
        $region55: #{tpu_custom_call.1} parent=11 // pred_region
          %s594 = ssub.s32 16, 16
          %595 = vsyncadd [#allocation24], %s594
          %s597 = sshll.u32 [#allocation23], 4
          %s598 = int_to_ptr.vmem [resolvable:$true] %s597
          %600 = dma.hbm_to_vmem [thread:$0]  %s13, 16, %s598, [#allocation24]
        $region56: #{tpu_custom_call.1} parent=11 // pred_fallthru
          _
        // Predicated region
        $region57: #{tpu_custom_call.1} parent=11 // pred_check
          %p601 = pneg %p385
        $region58: #{tpu_custom_call.1} parent=11 // pred_check_branch
          %603 = sbr.rel (%p601) target = $region60
        $region59: #{tpu_custom_call.1} parent=11 // pred_region
          %s605 = ssub.s32 16, 16
          %606 = vsyncadd [#allocation24], %s605
          %s608 = sshll.u32 [#allocation25], 4
          %s609 = int_to_ptr.vmem [resolvable:$true] %s608
          %611 = dma.hbm_to_vmem [thread:$0]  %s14, 16, %s609, [#allocation24]
        $region60: #{tpu_custom_call.1} parent=11 // pred_fallthru
          _
        // Predicated region
        $region61: #{tpu_custom_call.1} parent=11 // pred_check
          %p612 = pneg %p406
        $region62: #{tpu_custom_call.1} parent=11 // pred_check_branch
          %614 = sbr.rel (%p612) target = $region64
        $region63: #{tpu_custom_call.1} parent=11 // pred_region
          %s616 = ssub.s32 16, 16
          %617 = vsyncadd [#allocation27], %s616
          %s619 = sshll.u32 [#allocation26], 4
          %s620 = int_to_ptr.vmem [resolvable:$true] %s619
          %622 = dma.hbm_to_vmem [thread:$0]  %s15, 16, %s620, [#allocation27]
        $region64: #{tpu_custom_call.1} parent=11 // pred_fallthru
          _
        // Predicated region
        $region65: #{tpu_custom_call.1} parent=11 // pred_check
          %p623 = pneg %p427
        $region66: #{tpu_custom_call.1} parent=11 // pred_check_branch
          %625 = sbr.rel (%p623) target = $region68
        $region67: #{tpu_custom_call.1} parent=11 // pred_region
          %s627 = ssub.s32 16, 16
          %628 = vsyncadd [#allocation27], %s627
          %s630 = sshll.u32 [#allocation28], 4
          %s631 = int_to_ptr.vmem [resolvable:$true] %s630
          %633 = dma.hbm_to_vmem [thread:$0]  %s16, 16, %s631, [#allocation27]
        $region68: #{tpu_custom_call.1} parent=11 // pred_fallthru
          _
      $region12: #{tpu_custom_call.1} parent=5 // pred_fallthru
        _
      %p634 = scmp.lt.s32.totalorder %s39, 2
      // Predicated region
      $region69: #{tpu_custom_call.1} parent=5 // pred_check
        %p635 = pneg %p634
      $region70: #{tpu_custom_call.1} parent=5 // pred_check_branch
        %637 = sbr.rel (%p635) target = $region72
      $region71: #{tpu_custom_call.1} parent=5 // pred_region
        // Predicated region
        $region73: #{tpu_custom_call.1} parent=71 // pred_check
          %p638 = pneg %p73
        $region74: #{tpu_custom_call.1} parent=71 // pred_check_branch
          %640 = sbr.rel (%p638) target = $region76
        $region75: #{tpu_custom_call.1} parent=71 // pred_region
          %s641 = sand.u32 %s63, 1
          %s642 = scalar_lea.sflag [#allocation3], %s641
          %s643 = sand.u32 %s63, 1
          %s644 = smul.addr %s643, 8
          %s645 = scalar_lea.vmem [#allocation2], %s644
          %s647 = ssub.s32 128, 128
          %648 = vsyncadd %s642, %s647
          %s649 = sadd.s32 %s47, %s46
          %s650 = smul.addr %s649, 128
          %s651 = scalar_lea.hbm %s0, %s650
          %s653 = sshll.u32 %s645, 4
          %s654 = int_to_ptr.vmem [resolvable:$true] %s653
          %656 = dma.hbm_to_vmem [thread:$0]  %s651, 128, %s654, %s642
        $region76: #{tpu_custom_call.1} parent=71 // pred_fallthru
          _
        // Predicated region
        $region77: #{tpu_custom_call.1} parent=71 // pred_check
          %p657 = pneg %p99
        $region78: #{tpu_custom_call.1} parent=71 // pred_check_branch
          %659 = sbr.rel (%p657) target = $region80
        $region79: #{tpu_custom_call.1} parent=71 // pred_region
          %s660 = sand.u32 %s39, 1
          %s661 = scalar_lea.sflag [#allocation6], %s660
          %s662 = sand.u32 %s89, 1
          %s663 = smul.addr %s662, 8
          %s664 = scalar_lea.vmem [#allocation5], %s663
          %s666 = ssub.s32 128, 128
          %667 = vsyncadd %s661, %s666
          %s668 = smul.addr %s46, 128
          %s669 = scalar_lea.hbm %s1, %s668
          %s671 = sshll.u32 %s664, 4
          %s672 = int_to_ptr.vmem [resolvable:$true] %s671
          %674 = dma.hbm_to_vmem [thread:$0]  %s669, 128, %s672, %s661
        $region80: #{tpu_custom_call.1} parent=71 // pred_fallthru
          _
        // Predicated region
        $region81: #{tpu_custom_call.1} parent=71 // pred_check
          %p675 = pneg %p127
        $region82: #{tpu_custom_call.1} parent=71 // pred_check_branch
          %677 = sbr.rel (%p675) target = $region84
        $region83: #{tpu_custom_call.1} parent=71 // pred_region
          %s678 = sand.u32 %s39, 1
          %s679 = scalar_lea.sflag [#allocation6], %s678
          %s680 = sand.u32 %s117, 1
          %s681 = smul.addr %s680, 8
          %s682 = scalar_lea.vmem [#allocation7], %s681
          %s684 = ssub.s32 128, 128
          %685 = vsyncadd %s679, %s684
          %s686 = sadd.s32 %s47, %s46
          %s687 = smul.addr %s686, 128
          %s688 = scalar_lea.hbm %s2, %s687
          %s690 = sshll.u32 %s682, 4
          %s691 = int_to_ptr.vmem [resolvable:$true] %s690
          %693 = dma.hbm_to_vmem [thread:$0]  %s688, 128, %s691, %s679
        $region84: #{tpu_custom_call.1} parent=71 // pred_fallthru
          _
      $region72: #{tpu_custom_call.1} parent=5 // pred_fallthru
        _
      %p694 = scmp.le.s32.totalorder 1, %s39
      %p695 = scmp.lt.s32.totalorder %s39, 3
      %p696 = pnand %p694, %p695
      %p697 = pneg %p696
      // Predicated region
      $region85: #{tpu_custom_call.1} parent=5 // pred_check
        _
      $region86: #{tpu_custom_call.1} parent=5 // pred_check_branch
        %699 = sbr.rel (%p696) target = $region88
      $region87: #{tpu_custom_call.1} parent=5 // pred_region
        %s700 = ssub.s32 %s39, 1
        %s701 = sand.u32 %s66, 1
        %s702 = scalar_lea.sflag [#allocation3], %s701
        %s703 = sand.u32 %s66, 1
        %s704 = smul.addr %s703, 8
        %s705 = scalar_lea.vmem [#allocation2], %s704
        // Predicated region
        $region89: #{tpu_custom_call.1} parent=87 // pred_check
          %p706 = pneg %p79
        $region90: #{tpu_custom_call.1} parent=87 // pred_check_branch
          %708 = sbr.rel (%p706) target = $region92
        $region91: #{tpu_custom_call.1} parent=87 // pred_region
          %709 = dma.done %s702, 128
        $region92: #{tpu_custom_call.1} parent=87 // pred_fallthru
          _
        %s710 = sand.u32 %s44, 1
        %s711 = scalar_lea.sflag [#allocation6], %s710
        %s712 = sand.u32 %s92, 1
        %s713 = smul.addr %s712, 8
        %s714 = scalar_lea.vmem [#allocation5], %s713
        // Predicated region
        $region93: #{tpu_custom_call.1} parent=87 // pred_check
          %p715 = pneg %p105
        $region94: #{tpu_custom_call.1} parent=87 // pred_check_branch
          %717 = sbr.rel (%p715) target = $region96
        $region95: #{tpu_custom_call.1} parent=87 // pred_region
          %718 = dma.done %s711, 128
        $region96: #{tpu_custom_call.1} parent=87 // pred_fallthru
          _
        %s719 = sand.u32 %s44, 1
        %s720 = scalar_lea.sflag [#allocation6], %s719
        %s721 = sand.u32 %s120, 1
        %s722 = smul.addr %s721, 8
        %s723 = scalar_lea.vmem [#allocation7], %s722
        // Predicated region
        $region97: #{tpu_custom_call.1} parent=87 // pred_check
          %p724 = pneg %p133
        $region98: #{tpu_custom_call.1} parent=87 // pred_check_branch
          %726 = sbr.rel (%p724) target = $region100
        $region99: #{tpu_custom_call.1} parent=87 // pred_region
          %727 = dma.done %s720, 128
        $region100: #{tpu_custom_call.1} parent=87 // pred_fallthru
          _
        // Predicated region
        $region101: #{tpu_custom_call.1} parent=87 // pred_check
          %p728 = pneg %p154
        $region102: #{tpu_custom_call.1} parent=87 // pred_check_branch
          %730 = sbr.rel (%p728) target = $region104
        $region103: #{tpu_custom_call.1} parent=87 // pred_region
          %731 = dma.done [#allocation9], 256
        $region104: #{tpu_custom_call.1} parent=87 // pred_fallthru
          _
        // Predicated region
        $region105: #{tpu_custom_call.1} parent=87 // pred_check
          %p732 = pneg %p175
        $region106: #{tpu_custom_call.1} parent=87 // pred_check_branch
          %734 = sbr.rel (%p732) target = $region108
        $region107: #{tpu_custom_call.1} parent=87 // pred_region
          %735 = dma.done [#allocation9], 16
        $region108: #{tpu_custom_call.1} parent=87 // pred_fallthru
          _
        // Predicated region
        $region109: #{tpu_custom_call.1} parent=87 // pred_check
          %p736 = pneg %p196
        $region110: #{tpu_custom_call.1} parent=87 // pred_check_branch
          %738 = sbr.rel (%p736) target = $region112
        $region111: #{tpu_custom_call.1} parent=87 // pred_region
          %739 = dma.done [#allocation12], 256
        $region112: #{tpu_custom_call.1} parent=87 // pred_fallthru
          _
        // Predicated region
        $region113: #{tpu_custom_call.1} parent=87 // pred_check
          %p740 = pneg %p217
        $region114: #{tpu_custom_call.1} parent=87 // pred_check_branch
          %742 = sbr.rel (%p740) target = $region116
        $region115: #{tpu_custom_call.1} parent=87 // pred_region
          %743 = dma.done [#allocation12], 16
        $region116: #{tpu_custom_call.1} parent=87 // pred_fallthru
          _
        // Predicated region
        $region117: #{tpu_custom_call.1} parent=87 // pred_check
          %p744 = pneg %p238
        $region118: #{tpu_custom_call.1} parent=87 // pred_check_branch
          %746 = sbr.rel (%p744) target = $region120
        $region119: #{tpu_custom_call.1} parent=87 // pred_region
          %747 = dma.done [#allocation15], 256
        $region120: #{tpu_custom_call.1} parent=87 // pred_fallthru
          _
        // Predicated region
        $region121: #{tpu_custom_call.1} parent=87 // pred_check
          %p748 = pneg %p259
        $region122: #{tpu_custom_call.1} parent=87 // pred_check_branch
          %750 = sbr.rel (%p748) target = $region124
        $region123: #{tpu_custom_call.1} parent=87 // pred_region
          %751 = dma.done [#allocation15], 16
        $region124: #{tpu_custom_call.1} parent=87 // pred_fallthru
          _
        // Predicated region
        $region125: #{tpu_custom_call.1} parent=87 // pred_check
          %p752 = pneg %p280
        $region126: #{tpu_custom_call.1} parent=87 // pred_check_branch
          %754 = sbr.rel (%p752) target = $region128
        $region127: #{tpu_custom_call.1} parent=87 // pred_region
          %755 = dma.done [#allocation18], 256
        $region128: #{tpu_custom_call.1} parent=87 // pred_fallthru
          _
        // Predicated region
        $region129: #{tpu_custom_call.1} parent=87 // pred_check
          %p756 = pneg %p301
        $region130: #{tpu_custom_call.1} parent=87 // pred_check_branch
          %758 = sbr.rel (%p756) target = $region132
        $region131: #{tpu_custom_call.1} parent=87 // pred_region
          %759 = dma.done [#allocation18], 16
        $region132: #{tpu_custom_call.1} parent=87 // pred_fallthru
          _
        // Predicated region
        $region133: #{tpu_custom_call.1} parent=87 // pred_check
          %p760 = pneg %p322
        $region134: #{tpu_custom_call.1} parent=87 // pred_check_branch
          %762 = sbr.rel (%p760) target = $region136
        $region135: #{tpu_custom_call.1} parent=87 // pred_region
          %763 = dma.done [#allocation21], 1024
        $region136: #{tpu_custom_call.1} parent=87 // pred_fallthru
          _
        // Predicated region
        $region137: #{tpu_custom_call.1} parent=87 // pred_check
          %p764 = pneg %p343
        $region138: #{tpu_custom_call.1} parent=87 // pred_check_branch
          %766 = sbr.rel (%p764) target = $region140
        $region139: #{tpu_custom_call.1} parent=87 // pred_region
          %767 = dma.done [#allocation21], 16
        $region140: #{tpu_custom_call.1} parent=87 // pred_fallthru
          _
        // Predicated region
        $region141: #{tpu_custom_call.1} parent=87 // pred_check
          %p768 = pneg %p364
        $region142: #{tpu_custom_call.1} parent=87 // pred_check_branch
          %770 = sbr.rel (%p768) target = $region144
        $region143: #{tpu_custom_call.1} parent=87 // pred_region
          %771 = dma.done [#allocation24], 16
        $region144: #{tpu_custom_call.1} parent=87 // pred_fallthru
          _
        // Predicated region
        $region145: #{tpu_custom_call.1} parent=87 // pred_check
          %p772 = pneg %p385
        $region146: #{tpu_custom_call.1} parent=87 // pred_check_branch
          %774 = sbr.rel (%p772) target = $region148
        $region147: #{tpu_custom_call.1} parent=87 // pred_region
          %775 = dma.done [#allocation24], 16
        $region148: #{tpu_custom_call.1} parent=87 // pred_fallthru
          _
        // Predicated region
        $region149: #{tpu_custom_call.1} parent=87 // pred_check
          %p776 = pneg %p406
        $region150: #{tpu_custom_call.1} parent=87 // pred_check_branch
          %778 = sbr.rel (%p776) target = $region152
        $region151: #{tpu_custom_call.1} parent=87 // pred_region
          %779 = dma.done [#allocation27], 16
        $region152: #{tpu_custom_call.1} parent=87 // pred_fallthru
          _
        // Predicated region
        $region153: #{tpu_custom_call.1} parent=87 // pred_check
          %p780 = pneg %p427
        $region154: #{tpu_custom_call.1} parent=87 // pred_check_branch
          %782 = sbr.rel (%p780) target = $region156
        $region155: #{tpu_custom_call.1} parent=87 // pred_region
          %783 = dma.done [#allocation27], 16
        $region156: #{tpu_custom_call.1} parent=87 // pred_fallthru
          _
        %s784 = sand.u32 %s66, 1
        %s785 = scalar_lea.sflag [#allocation3], %s784
        %s786 = sand.u32 %s66, 1
        %s787 = smul.addr %s786, 8
        %s788 = scalar_lea.vmem [#allocation2], %s787
        %p789 = pneg %p79
        %p790 = pneg %p76
        %s791 = sand.u32 %s44, 1
        %s792 = scalar_lea.sflag [#allocation6], %s791
        %s793 = sand.u32 %s92, 1
        %s794 = smul.addr %s793, 8
        %s795 = scalar_lea.vmem [#allocation5], %s794
        %p796 = pneg %p105
        %p797 = pneg %p102
        %s798 = sand.u32 %s44, 1
        %s799 = scalar_lea.sflag [#allocation6], %s798
        %s800 = sand.u32 %s120, 1
        %s801 = smul.addr %s800, 8
        %s802 = scalar_lea.vmem [#allocation7], %s801
        %p803 = pneg %p133
        %p804 = pneg %p130
        %p805 = pneg %p154
        %p806 = pneg %p151
        %p807 = pneg %p175
        %p808 = pneg %p172
        %p809 = pneg %p196
        %p810 = pneg %p193
        %p811 = pneg %p217
        %p812 = pneg %p214
        %p813 = pneg %p238
        %p814 = pneg %p235
        %p815 = pneg %p259
        %p816 = pneg %p256
        %p817 = pneg %p280
        %p818 = pneg %p277
        %p819 = pneg %p301
        %p820 = pneg %p298
        %p821 = pneg %p322
        %p822 = pneg %p319
        %p823 = pneg %p343
        %p824 = pneg %p340
        %p825 = pneg %p364
        %p826 = pneg %p361
        %p827 = pneg %p385
        %p828 = pneg %p382
        %p829 = pneg %p406
        %p830 = pneg %p403
        %p831 = pneg %p427
        %p832 = pneg %p424
        %p833 = pneg %p455
        %p834 = pneg %p452
        %s835 = sand.u32 %s442, 1
        %s836 = scalar_lea.sflag [#allocation4], %s835
        %s837 = sand.u32 %s442, 1
        %s838 = smul.addr %s837, 8
        %s839 = scalar_lea.vmem [#allocation29], %s838
        %v841 = vld [vmem:[%s705] sm:$0xff]
        %v842 = vpack.c.bf16 %v841, %v841
        %v843 = vld [vmem:[%s714] sm:$0xff]
        %v844 = vpack.c.bf16 %v843, %v843
        %v845 = vld [vmem:[#allocation8] sm:$0xf]
        %v846 = vld [vmem:[#allocation8 + $0x4] sm:$0xf]
        %v847 = vld [vmem:[#allocation8 + $0x8] sm:$0xf]
        %v848 = vld [vmem:[#allocation8 + $0xc] sm:$0xf]
        %v849 = vld [vmem:[#allocation10] sm:$0x1]
        %v851 = vlaneseq
        %v852 = vshrl.u32 %v851, 7
        %v853 = vsub.s32 0, %v852
        %v854 = vrot.slane %v849, %v853
        %v860 = vunpack.c.l.b16 %v845
        %v861 = vunpack.c.l.b16 %v846
        %v862 = vunpack.c.l.b16 %v847
        %v863 = vunpack.c.l.b16 %v848
        %v864 = vpack.c.b16 %v861, %v860
        %v865 = vpack.c.b16 %v863, %v862
        %vm868 = vcmask 261120
        %v870 = vsel %vm868, %v842, 0
        %872 = vmatprep.subr.bf16.mxu0 0
        %873 = vmatpush1.bf16.msra.mxu0 %v864
        %874 = vmatprep.subr.bf16.mxu0 0
        %875 = vmatpush1.bf16.msra.mxu0 %v865
        %876 = vmatprep.subr.bf16.mxu0 0
        %877 = vmatpush1.bf16.msra.mxu0 0
        %878 = vmatprep.subr.bf16.mxu0 0
        %879 = vmatpush1.bf16.msra.mxu0 0
        %880 = vmatprep.subr.bf16.mxu0 0
        %881 = vmatpush1.bf16.msra.mxu0 0
        %882 = vmatprep.subr.bf16.mxu0 0
        %883 = vmatpush1.bf16.msra.mxu0 0
        %884 = vmatprep.subr.bf16.mxu0 0
        %885 = vmatpush1.bf16.msra.mxu0 0
        %886 = vmatprep.subr.bf16.mxu0 0
        %887 = vmatpush1.bf16.msra.mxu0 0
        %888 = vmatprep.subr.bf16.mxu0 0
        %889 = vmatpush1.bf16.msra.mxu0 0
        %890 = vmatprep.subr.bf16.mxu0 0
        %891 = vmatpush1.bf16.msra.mxu0 0
        %892 = vmatprep.subr.bf16.mxu0 0
        %893 = vmatpush1.bf16.msra.mxu0 0
        %894 = vmatprep.subr.bf16.mxu0 0
        %895 = vmatpush1.bf16.msra.mxu0 0
        %896 = vmatprep.subr.bf16.mxu0 0
        %897 = vmatpush1.bf16.msra.mxu0 0
        %898 = vmatprep.subr.bf16.mxu0 0
        %899 = vmatpush1.bf16.msra.mxu0 0
        %900 = vmatprep.subr.bf16.mxu0 0
        %901 = vmatpush1.bf16.msra.mxu0 0
        %902 = vmatprep.subr.bf16.mxu0 0
        %903 = vmatpush1.bf16.msra.mxu0 0
        %904 = vmatprep.mubr.bf16.mxu0 0
        %905 = vmatmul.mubr.bf16.gmra.mrb[0].mxu0 %v870
        %v906 = vpop.f32.mrb[0].mxu0
        %v907 = vadd.f32 %v854, %v906
        %v908 = vpop.f32.mrb[0].mxu0
        %v909 = vpop.f32.mrb[0].mxu0
        %v910 = vpop.f32.mrb[0].mxu0
        %911 = vdwg.mxu0
        %v912 = vld [vmem:[#allocation11] sm:$0xf]
        %v913 = vld [vmem:[#allocation11 + $0x4] sm:$0xf]
        %v914 = vld [vmem:[#allocation11 + $0x8] sm:$0xf]
        %v915 = vld [vmem:[#allocation11 + $0xc] sm:$0xf]
        %v916 = vld [vmem:[#allocation13] sm:$0x1]
        %v918 = vlaneseq
        %v919 = vshrl.u32 %v918, 7
        %v920 = vsub.s32 0, %v919
        %v921 = vrot.slane %v916, %v920
        %v927 = vunpack.c.l.b16 %v912
        %v928 = vunpack.c.l.b16 %v913
        %v929 = vunpack.c.l.b16 %v914
        %v930 = vunpack.c.l.b16 %v915
        %v931 = vpack.c.b16 %v928, %v927
        %v932 = vpack.c.b16 %v930, %v929
        %v936 = vsel %vm868, %v844, 0
        %938 = vmatprep.subr.bf16.mxu0 0
        %939 = vmatpush1.bf16.msra.mxu0 %v931
        %940 = vmatprep.subr.bf16.mxu0 0
        %941 = vmatpush1.bf16.msra.mxu0 %v932
        %942 = vmatprep.subr.bf16.mxu0 0
        %943 = vmatpush1.bf16.msra.mxu0 0
        %944 = vmatprep.subr.bf16.mxu0 0
        %945 = vmatpush1.bf16.msra.mxu0 0
        %946 = vmatprep.subr.bf16.mxu0 0
        %947 = vmatpush1.bf16.msra.mxu0 0
        %948 = vmatprep.subr.bf16.mxu0 0
        %949 = vmatpush1.bf16.msra.mxu0 0
        %950 = vmatprep.subr.bf16.mxu0 0
        %951 = vmatpush1.bf16.msra.mxu0 0
        %952 = vmatprep.subr.bf16.mxu0 0
        %953 = vmatpush1.bf16.msra.mxu0 0
        %954 = vmatprep.subr.bf16.mxu0 0
        %955 = vmatpush1.bf16.msra.mxu0 0
        %956 = vmatprep.subr.bf16.mxu0 0
        %957 = vmatpush1.bf16.msra.mxu0 0
        %958 = vmatprep.subr.bf16.mxu0 0
        %959 = vmatpush1.bf16.msra.mxu0 0
        %960 = vmatprep.subr.bf16.mxu0 0
        %961 = vmatpush1.bf16.msra.mxu0 0
        %962 = vmatprep.subr.bf16.mxu0 0
        %963 = vmatpush1.bf16.msra.mxu0 0
        %964 = vmatprep.subr.bf16.mxu0 0
        %965 = vmatpush1.bf16.msra.mxu0 0
        %966 = vmatprep.subr.bf16.mxu0 0
        %967 = vmatpush1.bf16.msra.mxu0 0
        %968 = vmatprep.subr.bf16.mxu0 0
        %969 = vmatpush1.bf16.msra.mxu0 0
        %970 = vmatprep.mubr.bf16.mxu0 0
        %971 = vmatmul.mubr.bf16.gmra.mrb[0].mxu0 %v936
        %v972 = vpop.f32.mrb[0].mxu0
        %v973 = vadd.f32 %v921, %v972
        %v974 = vpop.f32.mrb[0].mxu0
        %v975 = vpop.f32.mrb[0].mxu0
        %v976 = vpop.f32.mrb[0].mxu0
        %977 = vdwg.mxu0
        %v978 = vpack.c.bf16 %v907, %v907
        %v979 = vpack.c.bf16 %v973, %v973
        %981 = vrot.lane.b32.xlu0 %v978, 120
        %v982 = vpop.permute.xlu0 %981
        %983 = vrot.lane.b32.xlu0 %v978, 112
        %v984 = vpop.permute.xlu0 %983
        %985 = vrot.lane.b32.xlu0 %v978, 104
        %v986 = vpop.permute.xlu0 %985
        %988 = vrot.lane.b32.xlu0 %v979, 120
        %v989 = vpop.permute.xlu0 %988
        %990 = vrot.lane.b32.xlu0 %v979, 112
        %v991 = vpop.permute.xlu0 %990
        %992 = vrot.lane.b32.xlu0 %v979, 104
        %v993 = vpop.permute.xlu0 %992
        %vm994 = vcmask 64512
        %v996 = vsel %vm994, %v978, 0
        %v999 = vsel %vm994, %v979, 0
        %1001 = vmatprep.subr.bf16.mxu0 0
        %1002 = vmatpush1.bf16.xpose.msra.mxu0 %v999
        %1003 = vmatprep.subr.bf16.mxu0 0
        %1004 = vmatpush1.bf16.xpose.msra.mxu0 0
        %1005 = vmatprep.subr.bf16.mxu0 0
        %1006 = vmatpush1.bf16.xpose.msra.mxu0 0
        %1007 = vmatprep.subr.bf16.mxu0 0
        %1008 = vmatpush1.bf16.xpose.msra.mxu0 0
        %1009 = vmatprep.subr.bf16.mxu0 0
        %1010 = vmatpush1.bf16.xpose.msra.mxu0 0
        %1011 = vmatprep.subr.bf16.mxu0 0
        %1012 = vmatpush1.bf16.xpose.msra.mxu0 0
        %1013 = vmatprep.subr.bf16.mxu0 0
        %1014 = vmatpush1.bf16.xpose.msra.mxu0 0
        %1015 = vmatprep.subr.bf16.mxu0 0
        %1016 = vmatpush1.bf16.xpose.msra.mxu0 0
        %1017 = vmatprep.subr.bf16.mxu0 0
        %1018 = vmatpush1.bf16.xpose.msra.mxu0 0
        %1019 = vmatprep.subr.bf16.mxu0 0
        %1020 = vmatpush1.bf16.xpose.msra.mxu0 0
        %1021 = vmatprep.subr.bf16.mxu0 0
        %1022 = vmatpush1.bf16.xpose.msra.mxu0 0
        %1023 = vmatprep.subr.bf16.mxu0 0
        %1024 = vmatpush1.bf16.xpose.msra.mxu0 0
        %1025 = vmatprep.subr.bf16.mxu0 0
        %1026 = vmatpush1.bf16.xpose.msra.mxu0 0
        %1027 = vmatprep.subr.bf16.mxu0 0
        %1028 = vmatpush1.bf16.xpose.msra.mxu0 0
        %1029 = vmatprep.subr.bf16.mxu0 0
        %1030 = vmatpush1.bf16.xpose.msra.mxu0 0
        %1031 = vmatprep.subr.bf16.mxu0 0
        %1032 = vmatpush1.bf16.xpose.msra.mxu0 0
        %1033 = vmatprep.mubr.bf16.mxu0 0
        %1034 = vmatmul.mubr.bf16.gmra.mrb[0].mxu0 %v996
        %v1035 = vpop.f32.mrb[0].mxu0
        %v1036 = vadd.f32 0.0, %v1035
        %v1037 = vpop.f32.mrb[0].mxu0
        %v1038 = vpop.f32.mrb[0].mxu0
        %v1039 = vpop.f32.mrb[0].mxu0
        %1040 = vdwg.mxu0
        %v1042 = vsel %vm994, %v982, 0
        %v1045 = vsel %vm994, %v989, 0
        %1047 = vmatprep.subr.bf16.mxu0 0
        %1048 = vmatpush1.bf16.xpose.msra.mxu0 %v1045
        %1049 = vmatprep.subr.bf16.mxu0 0
        %1050 = vmatpush1.bf16.xpose.msra.mxu0 0
        %1051 = vmatprep.subr.bf16.mxu0 0
        %1052 = vmatpush1.bf16.xpose.msra.mxu0 0
        %1053 = vmatprep.subr.bf16.mxu0 0
        %1054 = vmatpush1.bf16.xpose.msra.mxu0 0
        %1055 = vmatprep.subr.bf16.mxu0 0
        %1056 = vmatpush1.bf16.xpose.msra.mxu0 0
        %1057 = vmatprep.subr.bf16.mxu0 0
        %1058 = vmatpush1.bf16.xpose.msra.mxu0 0
        %1059 = vmatprep.subr.bf16.mxu0 0
        %1060 = vmatpush1.bf16.xpose.msra.mxu0 0
        %1061 = vmatprep.subr.bf16.mxu0 0
        %1062 = vmatpush1.bf16.xpose.msra.mxu0 0
        %1063 = vmatprep.subr.bf16.mxu0 0
        %1064 = vmatpush1.bf16.xpose.msra.mxu0 0
        %1065 = vmatprep.subr.bf16.mxu0 0
        %1066 = vmatpush1.bf16.xpose.msra.mxu0 0
        %1067 = vmatprep.subr.bf16.mxu0 0
        %1068 = vmatpush1.bf16.xpose.msra.mxu0 0
        %1069 = vmatprep.subr.bf16.mxu0 0
        %1070 = vmatpush1.bf16.xpose.msra.mxu0 0
        %1071 = vmatprep.subr.bf16.mxu0 0
        %1072 = vmatpush1.bf16.xpose.msra.mxu0 0
        %1073 = vmatprep.subr.bf16.mxu0 0
        %1074 = vmatpush1.bf16.xpose.msra.mxu0 0
        %1075 = vmatprep.subr.bf16.mxu0 0
        %1076 = vmatpush1.bf16.xpose.msra.mxu0 0
        %1077 = vmatprep.subr.bf16.mxu0 0
        %1078 = vmatpush1.bf16.xpose.msra.mxu0 0
        %1079 = vmatprep.mubr.bf16.mxu0 0
        %1080 = vmatmul.mubr.bf16.gmra.mrb[0].mxu0 %v1042
        %v1081 = vpop.f32.mrb[0].mxu0
        %v1082 = vadd.f32 0.0, %v1081
        %v1083 = vpop.f32.mrb[0].mxu0
        %v1084 = vpop.f32.mrb[0].mxu0
        %v1085 = vpop.f32.mrb[0].mxu0
        %1086 = vdwg.mxu0
        %v1088 = vsel %vm994, %v984, 0
        %v1091 = vsel %vm994, %v991, 0
        %1093 = vmatprep.subr.bf16.mxu0 0
        %1094 = vmatpush1.bf16.xpose.msra.mxu0 %v1091
        %1095 = vmatprep.subr.bf16.mxu0 0
        %1096 = vmatpush1.bf16.xpose.msra.mxu0 0
        %1097 = vmatprep.subr.bf16.mxu0 0
        %1098 = vmatpush1.bf16.xpose.msra.mxu0 0
        %1099 = vmatprep.subr.bf16.mxu0 0
        %1100 = vmatpush1.bf16.xpose.msra.mxu0 0
        %1101 = vmatprep.subr.bf16.mxu0 0
        %1102 = vmatpush1.bf16.xpose.msra.mxu0 0
        %1103 = vmatprep.subr.bf16.mxu0 0
        %1104 = vmatpush1.bf16.xpose.msra.mxu0 0
        %1105 = vmatprep.subr.bf16.mxu0 0
        %1106 = vmatpush1.bf16.xpose.msra.mxu0 0
        %1107 = vmatprep.subr.bf16.mxu0 0
        %1108 = vmatpush1.bf16.xpose.msra.mxu0 0
        %1109 = vmatprep.subr.bf16.mxu0 0
        %1110 = vmatpush1.bf16.xpose.msra.mxu0 0
        %1111 = vmatprep.subr.bf16.mxu0 0
        %1112 = vmatpush1.bf16.xpose.msra.mxu0 0
        %1113 = vmatprep.subr.bf16.mxu0 0
        %1114 = vmatpush1.bf16.xpose.msra.mxu0 0
        %1115 = vmatprep.subr.bf16.mxu0 0
        %1116 = vmatpush1.bf16.xpose.msra.mxu0 0
        %1117 = vmatprep.subr.bf16.mxu0 0
        %1118 = vmatpush1.bf16.xpose.msra.mxu0 0
        %1119 = vmatprep.subr.bf16.mxu0 0
        %1120 = vmatpush1.bf16.xpose.msra.mxu0 0
        %1121 = vmatprep.subr.bf16.mxu0 0
        %1122 = vmatpush1.bf16.xpose.msra.mxu0 0
        %1123 = vmatprep.subr.bf16.mxu0 0
        %1124 = vmatpush1.bf16.xpose.msra.mxu0 0
        %1125 = vmatprep.mubr.bf16.mxu0 0
        %1126 = vmatmul.mubr.bf16.gmra.mrb[0].mxu0 %v1088
        %v1127 = vpop.f32.mrb[0].mxu0
        %v1128 = vadd.f32 0.0, %v1127
        %v1129 = vpop.f32.mrb[0].mxu0
        %v1130 = vpop.f32.mrb[0].mxu0
        %v1131 = vpop.f32.mrb[0].mxu0
        %1132 = vdwg.mxu0
        %v1134 = vsel %vm994, %v986, 0
        %v1137 = vsel %vm994, %v993, 0
        %1139 = vmatprep.subr.bf16.mxu0 0
        %1140 = vmatpush1.bf16.xpose.msra.mxu0 %v1137
        %1141 = vmatprep.subr.bf16.mxu0 0
        %1142 = vmatpush1.bf16.xpose.msra.mxu0 0
        %1143 = vmatprep.subr.bf16.mxu0 0
        %1144 = vmatpush1.bf16.xpose.msra.mxu0 0
        %1145 = vmatprep.subr.bf16.mxu0 0
        %1146 = vmatpush1.bf16.xpose.msra.mxu0 0
        %1147 = vmatprep.subr.bf16.mxu0 0
        %1148 = vmatpush1.bf16.xpose.msra.mxu0 0
        %1149 = vmatprep.subr.bf16.mxu0 0
        %1150 = vmatpush1.bf16.xpose.msra.mxu0 0
        %1151 = vmatprep.subr.bf16.mxu0 0
        %1152 = vmatpush1.bf16.xpose.msra.mxu0 0
        %1153 = vmatprep.subr.bf16.mxu0 0
        %1154 = vmatpush1.bf16.xpose.msra.mxu0 0
        %1155 = vmatprep.subr.bf16.mxu0 0
        %1156 = vmatpush1.bf16.xpose.msra.mxu0 0
        %1157 = vmatprep.subr.bf16.mxu0 0
        %1158 = vmatpush1.bf16.xpose.msra.mxu0 0
        %1159 = vmatprep.subr.bf16.mxu0 0
        %1160 = vmatpush1.bf16.xpose.msra.mxu0 0
        %1161 = vmatprep.subr.bf16.mxu0 0
        %1162 = vmatpush1.bf16.xpose.msra.mxu0 0
        %1163 = vmatprep.subr.bf16.mxu0 0
        %1164 = vmatpush1.bf16.xpose.msra.mxu0 0
        %1165 = vmatprep.subr.bf16.mxu0 0
        %1166 = vmatpush1.bf16.xpose.msra.mxu0 0
        %1167 = vmatprep.subr.bf16.mxu0 0
        %1168 = vmatpush1.bf16.xpose.msra.mxu0 0
        %1169 = vmatprep.subr.bf16.mxu0 0
        %1170 = vmatpush1.bf16.xpose.msra.mxu0 0
        %1171 = vmatprep.mubr.bf16.mxu0 0
        %1172 = vmatmul.mubr.bf16.gmra.mrb[0].mxu0 %v1134
        %v1173 = vpop.f32.mrb[0].mxu0
        %v1174 = vadd.f32 0.0, %v1173
        %v1175 = vpop.f32.mrb[0].mxu0
        %v1176 = vpop.f32.mrb[0].mxu0
        %v1177 = vpop.f32.mrb[0].mxu0
        %1178 = vdwg.mxu0
        %v1179 = vmul.f32 %v1036, 0.35355338
        %v1180 = vmul.f32 %v1082, 0.35355338
        %v1181 = vmul.f32 %v1128, 0.35355338
        %v1182 = vmul.f32 %v1174, 0.35355338
        %v1183 = vld [vmem:[%s723] sm:$0xff]
        %vm1184 = vcmp.eq.f32.partialorder %v1183, 0.0
        %v1185 = vsel %vm1184, 1, 0
        %1186 = vset.pattern.permute.xlu0 0
        %1187 = vperm.xlu0 %1186, %v1185
        %v1188 = vpop.permute.xlu0 %1187
        %vm1189 = vcmp.eq.s32.totalorder %v1188, 1
        %v1190 = vsel %vm1189, -1e+09, %v1179
        %v1191 = vsel %vm1189, -1e+09, %v1180
        %v1192 = vsel %vm1189, -1e+09, %v1181
        %v1193 = vsel %vm1189, -1e+09, %v1182
        %v1194 = vsel %vm994, %v1190, -inf
        %1195 = vmax.xlane.f32.xlu0 %v1194
        %v1196 = vpop.xlane.xlu0 %1195
        %v1197 = vsel %vm994, %v1191, -inf
        %1198 = vmax.xlane.f32.xlu0 %v1197
        %v1199 = vpop.xlane.xlu0 %1198
        %v1200 = vsel %vm994, %v1192, -inf
        %1201 = vmax.xlane.f32.xlu0 %v1200
        %v1202 = vpop.xlane.xlu0 %1201
        %v1203 = vsel %vm994, %v1193, -inf
        %1204 = vmax.xlane.f32.xlu0 %v1203
        %v1205 = vpop.xlane.xlu0 %1204
        %v1206 = vsub.f32 %v1190, %v1196
        %v1207 = vsub.f32 %v1191, %v1199
        %v1208 = vsub.f32 %v1192, %v1202
        %v1209 = vsub.f32 %v1193, %v1205
        %v1210 = vmul.f32 %v1206, 1.442695
        %v1211 = vpow.pop %v1210
        %v1212 = vmul.f32 %v1207, 1.442695
        %v1213 = vpow.pop %v1212
        %v1214 = vmul.f32 %v1208, 1.442695
        %v1215 = vpow.pop %v1214
        %v1216 = vmul.f32 %v1209, 1.442695
        %v1217 = vpow.pop %v1216
        %v1218 = vsel %vm994, %v1211, 0.0
        %1219 = vadd.xlane.f32.xlu0 %v1218
        %v1220 = vpop.xlane.xlu0 %1219
        %v1221 = vsel %vm994, %v1213, 0.0
        %1222 = vadd.xlane.f32.xlu0 %v1221
        %v1223 = vpop.xlane.xlu0 %1222
        %v1224 = vsel %vm994, %v1215, 0.0
        %1225 = vadd.xlane.f32.xlu0 %v1224
        %v1226 = vpop.xlane.xlu0 %1225
        %v1227 = vsel %vm994, %v1217, 0.0
        %1228 = vadd.xlane.f32.xlu0 %v1227
        %v1229 = vpop.xlane.xlu0 %1228
        %v1230 = vrcp.pop %v1220
        %v1231 = vrcp.pop %v1223
        %v1232 = vrcp.pop %v1226
        %v1233 = vrcp.pop %v1229
        %v1234 = vmul.f32 %v1211, %v1230
        %v1235 = vmul.f32 %v1213, %v1231
        %v1236 = vmul.f32 %v1215, %v1232
        %v1237 = vmul.f32 %v1217, %v1233
        %v1238 = vpack.c.bf16 %v1234, %v1234
        %v1239 = vpack.c.bf16 %v1235, %v1235
        %v1240 = vpack.c.bf16 %v1236, %v1236
        %v1241 = vpack.c.bf16 %v1237, %v1237
        %1242 = vrot.lane.b32.xlu0 %v979, 96
        %v1243 = vpop.permute.xlu0 %1242
        %v1245 = vsel %vm994, %v1238, 0
        %vm1247 = vcmask 1043456
        %v1249 = vsel %vm1247, %v1243, 0
        %1251 = vmatprep.subr.bf16.mxu0 0
        %1252 = vmatpush1.bf16.msra.mxu0 %v1249
        %1253 = vmatprep.subr.bf16.mxu0 0
        %1254 = vmatpush1.bf16.msra.mxu0 0
        %1255 = vmatprep.subr.bf16.mxu0 0
        %1256 = vmatpush1.bf16.msra.mxu0 0
        %1257 = vmatprep.subr.bf16.mxu0 0
        %1258 = vmatpush1.bf16.msra.mxu0 0
        %1259 = vmatprep.subr.bf16.mxu0 0
        %1260 = vmatpush1.bf16.msra.mxu0 0
        %1261 = vmatprep.subr.bf16.mxu0 0
        %1262 = vmatpush1.bf16.msra.mxu0 0
        %1263 = vmatprep.subr.bf16.mxu0 0
        %1264 = vmatpush1.bf16.msra.mxu0 0
        %1265 = vmatprep.subr.bf16.mxu0 0
        %1266 = vmatpush1.bf16.msra.mxu0 0
        %1267 = vmatprep.subr.bf16.mxu0 0
        %1268 = vmatpush1.bf16.msra.mxu0 0
        %1269 = vmatprep.subr.bf16.mxu0 0
        %1270 = vmatpush1.bf16.msra.mxu0 0
        %1271 = vmatprep.subr.bf16.mxu0 0
        %1272 = vmatpush1.bf16.msra.mxu0 0
        %1273 = vmatprep.subr.bf16.mxu0 0
        %1274 = vmatpush1.bf16.msra.mxu0 0
        %1275 = vmatprep.subr.bf16.mxu0 0
        %1276 = vmatpush1.bf16.msra.mxu0 0
        %1277 = vmatprep.subr.bf16.mxu0 0
        %1278 = vmatpush1.bf16.msra.mxu0 0
        %1279 = vmatprep.subr.bf16.mxu0 0
        %1280 = vmatpush1.bf16.msra.mxu0 0
        %1281 = vmatprep.subr.bf16.mxu0 0
        %1282 = vmatpush1.bf16.msra.mxu0 0
        %1283 = vmatprep.mubr.bf16.mxu0 0
        %1284 = vmatmul.mubr.bf16.gmra.mrb[0].mxu0 %v1245
        %v1285 = vpop.f32.mrb[0].mxu0
        %v1286 = vadd.f32 0.0, %v1285
        %v1287 = vpop.f32.mrb[0].mxu0
        %v1288 = vpop.f32.mrb[0].mxu0
        %v1289 = vpop.f32.mrb[0].mxu0
        %1290 = vdwg.mxu0
        %1291 = vrot.lane.b32.xlu0 %v989, 96
        %v1292 = vpop.permute.xlu0 %1291
        %v1294 = vsel %vm994, %v1239, 0
        %v1297 = vsel %vm1247, %v1292, 0
        %1299 = vmatprep.subr.bf16.mxu0 0
        %1300 = vmatpush1.bf16.msra.mxu0 %v1297
        %1301 = vmatprep.subr.bf16.mxu0 0
        %1302 = vmatpush1.bf16.msra.mxu0 0
        %1303 = vmatprep.subr.bf16.mxu0 0
        %1304 = vmatpush1.bf16.msra.mxu0 0
        %1305 = vmatprep.subr.bf16.mxu0 0
        %1306 = vmatpush1.bf16.msra.mxu0 0
        %1307 = vmatprep.subr.bf16.mxu0 0
        %1308 = vmatpush1.bf16.msra.mxu0 0
        %1309 = vmatprep.subr.bf16.mxu0 0
        %1310 = vmatpush1.bf16.msra.mxu0 0
        %1311 = vmatprep.subr.bf16.mxu0 0
        %1312 = vmatpush1.bf16.msra.mxu0 0
        %1313 = vmatprep.subr.bf16.mxu0 0
        %1314 = vmatpush1.bf16.msra.mxu0 0
        %1315 = vmatprep.subr.bf16.mxu0 0
        %1316 = vmatpush1.bf16.msra.mxu0 0
        %1317 = vmatprep.subr.bf16.mxu0 0
        %1318 = vmatpush1.bf16.msra.mxu0 0
        %1319 = vmatprep.subr.bf16.mxu0 0
        %1320 = vmatpush1.bf16.msra.mxu0 0
        %1321 = vmatprep.subr.bf16.mxu0 0
        %1322 = vmatpush1.bf16.msra.mxu0 0
        %1323 = vmatprep.subr.bf16.mxu0 0
        %1324 = vmatpush1.bf16.msra.mxu0 0
        %1325 = vmatprep.subr.bf16.mxu0 0
        %1326 = vmatpush1.bf16.msra.mxu0 0
        %1327 = vmatprep.subr.bf16.mxu0 0
        %1328 = vmatpush1.bf16.msra.mxu0 0
        %1329 = vmatprep.subr.bf16.mxu0 0
        %1330 = vmatpush1.bf16.msra.mxu0 0
        %1331 = vmatprep.mubr.bf16.mxu0 0
        %1332 = vmatmul.mubr.bf16.gmra.mrb[0].mxu0 %v1294
        %v1333 = vpop.f32.mrb[0].mxu0
        %v1334 = vadd.f32 0.0, %v1333
        %v1335 = vpop.f32.mrb[0].mxu0
        %v1336 = vpop.f32.mrb[0].mxu0
        %v1337 = vpop.f32.mrb[0].mxu0
        %1338 = vdwg.mxu0
        %1339 = vrot.lane.b32.xlu0 %v991, 96
        %v1340 = vpop.permute.xlu0 %1339
        %v1342 = vsel %vm994, %v1240, 0
        %v1345 = vsel %vm1247, %v1340, 0
        %1347 = vmatprep.subr.bf16.mxu0 0
        %1348 = vmatpush1.bf16.msra.mxu0 %v1345
        %1349 = vmatprep.subr.bf16.mxu0 0
        %1350 = vmatpush1.bf16.msra.mxu0 0
        %1351 = vmatprep.subr.bf16.mxu0 0
        %1352 = vmatpush1.bf16.msra.mxu0 0
        %1353 = vmatprep.subr.bf16.mxu0 0
        %1354 = vmatpush1.bf16.msra.mxu0 0
        %1355 = vmatprep.subr.bf16.mxu0 0
        %1356 = vmatpush1.bf16.msra.mxu0 0
        %1357 = vmatprep.subr.bf16.mxu0 0
        %1358 = vmatpush1.bf16.msra.mxu0 0
        %1359 = vmatprep.subr.bf16.mxu0 0
        %1360 = vmatpush1.bf16.msra.mxu0 0
        %1361 = vmatprep.subr.bf16.mxu0 0
        %1362 = vmatpush1.bf16.msra.mxu0 0
        %1363 = vmatprep.subr.bf16.mxu0 0
        %1364 = vmatpush1.bf16.msra.mxu0 0
        %1365 = vmatprep.subr.bf16.mxu0 0
        %1366 = vmatpush1.bf16.msra.mxu0 0
        %1367 = vmatprep.subr.bf16.mxu0 0
        %1368 = vmatpush1.bf16.msra.mxu0 0
        %1369 = vmatprep.subr.bf16.mxu0 0
        %1370 = vmatpush1.bf16.msra.mxu0 0
        %1371 = vmatprep.subr.bf16.mxu0 0
        %1372 = vmatpush1.bf16.msra.mxu0 0
        %1373 = vmatprep.subr.bf16.mxu0 0
        %1374 = vmatpush1.bf16.msra.mxu0 0
        %1375 = vmatprep.subr.bf16.mxu0 0
        %1376 = vmatpush1.bf16.msra.mxu0 0
        %1377 = vmatprep.subr.bf16.mxu0 0
        %1378 = vmatpush1.bf16.msra.mxu0 0
        %1379 = vmatprep.mubr.bf16.mxu0 0
        %1380 = vmatmul.mubr.bf16.gmra.mrb[0].mxu0 %v1342
        %v1381 = vpop.f32.mrb[0].mxu0
        %v1382 = vadd.f32 0.0, %v1381
        %v1383 = vpop.f32.mrb[0].mxu0
        %v1384 = vpop.f32.mrb[0].mxu0
        %v1385 = vpop.f32.mrb[0].mxu0
        %1386 = vdwg.mxu0
        %1387 = vrot.lane.b32.xlu0 %v993, 96
        %v1388 = vpop.permute.xlu0 %1387
        %v1390 = vsel %vm994, %v1241, 0
        %v1393 = vsel %vm1247, %v1388, 0
        %1395 = vmatprep.subr.bf16.mxu0 0
        %1396 = vmatpush1.bf16.msra.mxu0 %v1393
        %1397 = vmatprep.subr.bf16.mxu0 0
        %1398 = vmatpush1.bf16.msra.mxu0 0
        %1399 = vmatprep.subr.bf16.mxu0 0
        %1400 = vmatpush1.bf16.msra.mxu0 0
        %1401 = vmatprep.subr.bf16.mxu0 0
        %1402 = vmatpush1.bf16.msra.mxu0 0
        %1403 = vmatprep.subr.bf16.mxu0 0
        %1404 = vmatpush1.bf16.msra.mxu0 0
        %1405 = vmatprep.subr.bf16.mxu0 0
        %1406 = vmatpush1.bf16.msra.mxu0 0
        %1407 = vmatprep.subr.bf16.mxu0 0
        %1408 = vmatpush1.bf16.msra.mxu0 0
        %1409 = vmatprep.subr.bf16.mxu0 0
        %1410 = vmatpush1.bf16.msra.mxu0 0
        %1411 = vmatprep.subr.bf16.mxu0 0
        %1412 = vmatpush1.bf16.msra.mxu0 0
        %1413 = vmatprep.subr.bf16.mxu0 0
        %1414 = vmatpush1.bf16.msra.mxu0 0
        %1415 = vmatprep.subr.bf16.mxu0 0
        %1416 = vmatpush1.bf16.msra.mxu0 0
        %1417 = vmatprep.subr.bf16.mxu0 0
        %1418 = vmatpush1.bf16.msra.mxu0 0
        %1419 = vmatprep.subr.bf16.mxu0 0
        %1420 = vmatpush1.bf16.msra.mxu0 0
        %1421 = vmatprep.subr.bf16.mxu0 0
        %1422 = vmatpush1.bf16.msra.mxu0 0
        %1423 = vmatprep.subr.bf16.mxu0 0
        %1424 = vmatpush1.bf16.msra.mxu0 0
        %1425 = vmatprep.subr.bf16.mxu0 0
        %1426 = vmatpush1.bf16.msra.mxu0 0
        %1427 = vmatprep.mubr.bf16.mxu0 0
        %1428 = vmatmul.mubr.bf16.gmra.mrb[0].mxu0 %v1390
        %v1429 = vpop.f32.mrb[0].mxu0
        %v1430 = vadd.f32 0.0, %v1429
        %v1431 = vpop.f32.mrb[0].mxu0
        %v1432 = vpop.f32.mrb[0].mxu0
        %v1433 = vpop.f32.mrb[0].mxu0
        %1434 = vdwg.mxu0
        %1436 = vrot.lane.b32.xlu0 %v1334, 8
        %v1437 = vpop.permute.xlu0 %1436
        %1440 = vrot.lane.b32.xlu0 %v1382, 16
        %v1441 = vpop.permute.xlu0 %1440
        %1444 = vrot.lane.b32.xlu0 %v1430, 24
        %v1445 = vpop.permute.xlu0 %1444
        %v1447 = vsel %vm994, %v1286, %v1437
        %vm1448 = vcmask 130048
        %v1449 = vsel %vm1448, %v1447, %v1441
        %vm1450 = vcmask 195584
        %v1451 = vsel %vm1450, %v1449, %v1445
        %v1452 = vpack.c.bf16 %v1451, %v1451
        %v1453 = vld [vmem:[#allocation14] sm:$0xf]
        %v1454 = vld [vmem:[#allocation14 + $0x4] sm:$0xf]
        %v1455 = vld [vmem:[#allocation14 + $0x8] sm:$0xf]
        %v1456 = vld [vmem:[#allocation14 + $0xc] sm:$0xf]
        %v1457 = vld [vmem:[#allocation16] sm:$0x1]
        %v1459 = vlaneseq
        %v1460 = vshrl.u32 %v1459, 7
        %v1461 = vsub.s32 0, %v1460
        %v1462 = vrot.slane %v1457, %v1461
        %v1468 = vunpack.c.l.b16 %v1453
        %v1469 = vunpack.c.l.b16 %v1454
        %v1470 = vunpack.c.l.b16 %v1455
        %v1471 = vunpack.c.l.b16 %v1456
        %v1472 = vpack.c.b16 %v1469, %v1468
        %v1473 = vpack.c.b16 %v1471, %v1470
        %v1477 = vsel %vm868, %v1452, 0
        %1479 = vmatprep.subr.bf16.mxu0 0
        %1480 = vmatpush1.bf16.msra.mxu0 %v1472
        %1481 = vmatprep.subr.bf16.mxu0 0
        %1482 = vmatpush1.bf16.msra.mxu0 %v1473
        %1483 = vmatprep.subr.bf16.mxu0 0
        %1484 = vmatpush1.bf16.msra.mxu0 0
        %1485 = vmatprep.subr.bf16.mxu0 0
        %1486 = vmatpush1.bf16.msra.mxu0 0
        %1487 = vmatprep.subr.bf16.mxu0 0
        %1488 = vmatpush1.bf16.msra.mxu0 0
        %1489 = vmatprep.subr.bf16.mxu0 0
        %1490 = vmatpush1.bf16.msra.mxu0 0
        %1491 = vmatprep.subr.bf16.mxu0 0
        %1492 = vmatpush1.bf16.msra.mxu0 0
        %1493 = vmatprep.subr.bf16.mxu0 0
        %1494 = vmatpush1.bf16.msra.mxu0 0
        %1495 = vmatprep.subr.bf16.mxu0 0
        %1496 = vmatpush1.bf16.msra.mxu0 0
        %1497 = vmatprep.subr.bf16.mxu0 0
        %1498 = vmatpush1.bf16.msra.mxu0 0
        %1499 = vmatprep.subr.bf16.mxu0 0
        %1500 = vmatpush1.bf16.msra.mxu0 0
        %1501 = vmatprep.subr.bf16.mxu0 0
        %1502 = vmatpush1.bf16.msra.mxu0 0
        %1503 = vmatprep.subr.bf16.mxu0 0
        %1504 = vmatpush1.bf16.msra.mxu0 0
        %1505 = vmatprep.subr.bf16.mxu0 0
        %1506 = vmatpush1.bf16.msra.mxu0 0
        %1507 = vmatprep.subr.bf16.mxu0 0
        %1508 = vmatpush1.bf16.msra.mxu0 0
        %1509 = vmatprep.subr.bf16.mxu0 0
        %1510 = vmatpush1.bf16.msra.mxu0 0
        %1511 = vmatprep.mubr.bf16.mxu0 0
        %1512 = vmatmul.mubr.bf16.gmra.mrb[0].mxu0 %v1477
        %v1513 = vpop.f32.mrb[0].mxu0
        %v1514 = vadd.f32 %v1462, %v1513
        %v1515 = vpop.f32.mrb[0].mxu0
        %v1516 = vpop.f32.mrb[0].mxu0
        %v1517 = vpop.f32.mrb[0].mxu0
        %1518 = vdwg.mxu0
        %v1519 = vadd.f32 %v841, %v1514
        %v1520 = vsel %vm868, %v1519, 0.0
        %1521 = vadd.xlane.f32.xlu0 %v1520
        %v1522 = vpop.xlane.xlu0 %1521
        %v1523 = vrcp.pop 32.0
        %v1524 = vmul.f32 %v1522, %v1523
        %v1525 = vsub.f32 %v1519, %v1524
        %v1526 = vmul.f32 %v1525, %v1525
        %v1527 = vsel %vm868, %v1526, 0.0
        %1528 = vadd.xlane.f32.xlu0 %v1527
        %v1529 = vpop.xlane.xlu0 %1528
        %v1530 = vmul.f32 %v1529, %v1523
        %v1531 = vadd.f32 %v1530, 1e-12
        %v1532 = vrsqrt.pop %v1531
        %v1533 = vmul.f32 %v1525, %v1532
        %v1534 = vld [vmem:[#allocation23] sm:$0x1]
        %v1536 = vlaneseq
        %v1537 = vshrl.u32 %v1536, 7
        %v1538 = vsub.s32 0, %v1537
        %v1539 = vrot.slane %v1534, %v1538
        %v1541 = vmul.f32 %v1539, %v1533
        %v1542 = vld [vmem:[#allocation25] sm:$0x1]
        %v1544 = vlaneseq
        %v1545 = vshrl.u32 %v1544, 7
        %v1546 = vsub.s32 0, %v1545
        %v1547 = vrot.slane %v1542, %v1546
        %v1549 = vadd.f32 %v1541, %v1547
        %v1550 = vpack.c.bf16 %v1549, %v1549
        %v1551 = vld [vmem:[#allocation17] sm:$0xf]
        %v1552 = vld [vmem:[#allocation17 + $0x4] sm:$0xf]
        %v1553 = vld [vmem:[#allocation17 + $0x8] sm:$0xf]
        %v1554 = vld [vmem:[#allocation17 + $0xc] sm:$0xf]
        %v1555 = vld [vmem:[#allocation19] sm:$0x1]
        %v1557 = vlaneseq
        %v1558 = vshrl.u32 %v1557, 7
        %v1559 = vsub.s32 0, %v1558
        %v1560 = vrot.slane %v1555, %v1559
        %v1566 = vunpack.c.l.b16 %v1551
        %v1567 = vunpack.c.l.b16 %v1552
        %v1568 = vunpack.c.l.b16 %v1553
        %v1569 = vunpack.c.l.b16 %v1554
        %v1570 = vpack.c.b16 %v1567, %v1566
        %v1571 = vpack.c.b16 %v1569, %v1568
        %v1575 = vsel %vm868, %v1550, 0
        %1577 = vmatprep.subr.bf16.mxu0 0
        %1578 = vmatpush1.bf16.msra.mxu0 %v1570
        %1579 = vmatprep.subr.bf16.mxu0 0
        %1580 = vmatpush1.bf16.msra.mxu0 %v1571
        %1581 = vmatprep.subr.bf16.mxu0 0
        %1582 = vmatpush1.bf16.msra.mxu0 0
        %1583 = vmatprep.subr.bf16.mxu0 0
        %1584 = vmatpush1.bf16.msra.mxu0 0
        %1585 = vmatprep.subr.bf16.mxu0 0
        %1586 = vmatpush1.bf16.msra.mxu0 0
        %1587 = vmatprep.subr.bf16.mxu0 0
        %1588 = vmatpush1.bf16.msra.mxu0 0
        %1589 = vmatprep.subr.bf16.mxu0 0
        %1590 = vmatpush1.bf16.msra.mxu0 0
        %1591 = vmatprep.subr.bf16.mxu0 0
        %1592 = vmatpush1.bf16.msra.mxu0 0
        %1593 = vmatprep.subr.bf16.mxu0 0
        %1594 = vmatpush1.bf16.msra.mxu0 0
        %1595 = vmatprep.subr.bf16.mxu0 0
        %1596 = vmatpush1.bf16.msra.mxu0 0
        %1597 = vmatprep.subr.bf16.mxu0 0
        %1598 = vmatpush1.bf16.msra.mxu0 0
        %1599 = vmatprep.subr.bf16.mxu0 0
        %1600 = vmatpush1.bf16.msra.mxu0 0
        %1601 = vmatprep.subr.bf16.mxu0 0
        %1602 = vmatpush1.bf16.msra.mxu0 0
        %1603 = vmatprep.subr.bf16.mxu0 0
        %1604 = vmatpush1.bf16.msra.mxu0 0
        %1605 = vmatprep.subr.bf16.mxu0 0
        %1606 = vmatpush1.bf16.msra.mxu0 0
        %1607 = vmatprep.subr.bf16.mxu0 0
        %1608 = vmatpush1.bf16.msra.mxu0 0
        %1609 = vmatprep.mubr.bf16.mxu0 0
        %1610 = vmatmul.mubr.bf16.gmra.mrb[0].mxu0 %v1575
        %v1611 = vpop.f32.mrb[0].mxu0
        %v1612 = vadd.f32 %v1560, %v1611
        %v1613 = vpop.f32.mrb[0].mxu0
        %v1614 = vpop.f32.mrb[0].mxu0
        %v1615 = vpop.f32.mrb[0].mxu0
        %1616 = vdwg.mxu0
        %v1617 = vmul.f32 %v1612, 0.5
        %v1618 = vmul.f32 %v1612, %v1612
        %v1619 = vmul.f32 %v1612, %v1618
        %v1620 = vmul.f32 %v1619, 0.044715
        %v1621 = vadd.f32 %v1612, %v1620
        %v1622 = vmul.f32 %v1621, 0.7978846
        %v1623 = vtanh.pop %v1622
        %v1624 = vadd.f32 %v1623, 1.0
        %v1625 = vmul.f32 %v1617, %v1624
        %v1626 = vpack.c.bf16 %v1625, %v1625
        %v1627 = vld [vmem:[#allocation20] sm:$0xf]
        %v1628 = vld [vmem:[#allocation20 + $0x4] sm:$0xf]
        %v1629 = vld [vmem:[#allocation20 + $0x8] sm:$0xf]
        %v1630 = vld [vmem:[#allocation20 + $0xc] sm:$0xf]
        %v1631 = vld [vmem:[#allocation20 + $0x10] sm:$0xf]
        %v1632 = vld [vmem:[#allocation20 + $0x14] sm:$0xf]
        %v1633 = vld [vmem:[#allocation20 + $0x18] sm:$0xf]
        %v1634 = vld [vmem:[#allocation20 + $0x1c] sm:$0xf]
        %v1635 = vld [vmem:[#allocation20 + $0x20] sm:$0xf]
        %v1636 = vld [vmem:[#allocation20 + $0x24] sm:$0xf]
        %v1637 = vld [vmem:[#allocation20 + $0x28] sm:$0xf]
        %v1638 = vld [vmem:[#allocation20 + $0x2c] sm:$0xf]
        %v1639 = vld [vmem:[#allocation20 + $0x30] sm:$0xf]
        %v1640 = vld [vmem:[#allocation20 + $0x34] sm:$0xf]
        %v1641 = vld [vmem:[#allocation20 + $0x38] sm:$0xf]
        %v1642 = vld [vmem:[#allocation20 + $0x3c] sm:$0xf]
        %v1643 = vld [vmem:[#allocation22] sm:$0x1]
        %v1645 = vlaneseq
        %v1646 = vshrl.u32 %v1645, 7
        %v1647 = vsub.s32 0, %v1646
        %v1648 = vrot.slane %v1643, %v1647
        %v1666 = vunpack.c.l.b16 %v1627
        %v1667 = vunpack.c.l.b16 %v1628
        %v1668 = vunpack.c.l.b16 %v1629
        %v1669 = vunpack.c.l.b16 %v1630
        %v1670 = vunpack.c.l.b16 %v1631
        %v1671 = vunpack.c.l.b16 %v1632
        %v1672 = vunpack.c.l.b16 %v1633
        %v1673 = vunpack.c.l.b16 %v1634
        %v1674 = vunpack.c.l.b16 %v1635
        %v1675 = vunpack.c.l.b16 %v1636
        %v1676 = vunpack.c.l.b16 %v1637
        %v1677 = vunpack.c.l.b16 %v1638
        %v1678 = vunpack.c.l.b16 %v1639
        %v1679 = vunpack.c.l.b16 %v1640
        %v1680 = vunpack.c.l.b16 %v1641
        %v1681 = vunpack.c.l.b16 %v1642
        %v1682 = vpack.c.b16 %v1667, %v1666
        %v1683 = vpack.c.b16 %v1669, %v1668
        %v1684 = vpack.c.b16 %v1671, %v1670
        %v1685 = vpack.c.b16 %v1673, %v1672
        %v1686 = vpack.c.b16 %v1675, %v1674
        %v1687 = vpack.c.b16 %v1677, %v1676
        %v1688 = vpack.c.b16 %v1679, %v1678
        %v1689 = vpack.c.b16 %v1681, %v1680
        %1698 = vmatprep.subr.bf16.mxu0 0
        %1699 = vmatpush1.bf16.msra.mxu0 %v1682
        %1700 = vmatprep.subr.bf16.mxu0 0
        %1701 = vmatpush1.bf16.msra.mxu0 %v1683
        %1702 = vmatprep.subr.bf16.mxu0 0
        %1703 = vmatpush1.bf16.msra.mxu0 %v1684
        %1704 = vmatprep.subr.bf16.mxu0 0
        %1705 = vmatpush1.bf16.msra.mxu0 %v1685
        %1706 = vmatprep.subr.bf16.mxu0 0
        %1707 = vmatpush1.bf16.msra.mxu0 %v1686
        %1708 = vmatprep.subr.bf16.mxu0 0
        %1709 = vmatpush1.bf16.msra.mxu0 %v1687
        %1710 = vmatprep.subr.bf16.mxu0 0
        %1711 = vmatpush1.bf16.msra.mxu0 %v1688
        %1712 = vmatprep.subr.bf16.mxu0 0
        %1713 = vmatpush1.bf16.msra.mxu0 %v1689
        %1714 = vmatprep.subr.bf16.mxu0 0
        %1715 = vmatpush1.bf16.msra.mxu0 0
        %1716 = vmatprep.subr.bf16.mxu0 0
        %1717 = vmatpush1.bf16.msra.mxu0 0
        %1718 = vmatprep.subr.bf16.mxu0 0
        %1719 = vmatpush1.bf16.msra.mxu0 0
        %1720 = vmatprep.subr.bf16.mxu0 0
        %1721 = vmatpush1.bf16.msra.mxu0 0
        %1722 = vmatprep.subr.bf16.mxu0 0
        %1723 = vmatpush1.bf16.msra.mxu0 0
        %1724 = vmatprep.subr.bf16.mxu0 0
        %1725 = vmatpush1.bf16.msra.mxu0 0
        %1726 = vmatprep.subr.bf16.mxu0 0
        %1727 = vmatpush1.bf16.msra.mxu0 0
        %1728 = vmatprep.subr.bf16.mxu0 0
        %1729 = vmatpush1.bf16.msra.mxu0 0
        %1730 = vmatprep.mubr.bf16.mxu0 0
        %1731 = vmatmul.mubr.bf16.gmra.mrb[0].mxu0 %v1626
        %v1732 = vpop.f32.mrb[0].mxu0
        %v1733 = vadd.f32 %v1648, %v1732
        %v1734 = vpop.f32.mrb[0].mxu0
        %v1735 = vpop.f32.mrb[0].mxu0
        %v1736 = vpop.f32.mrb[0].mxu0
        %1737 = vdwg.mxu0
        %v1738 = vadd.f32 %v1549, %v1733
        %v1739 = vsel %vm868, %v1738, 0.0
        %1740 = vadd.xlane.f32.xlu0 %v1739
        %v1741 = vpop.xlane.xlu0 %1740
        %v1742 = vmul.f32 %v1741, %v1523
        %v1743 = vsub.f32 %v1738, %v1742
        %v1744 = vmul.f32 %v1743, %v1743
        %v1745 = vsel %vm868, %v1744, 0.0
        %1746 = vadd.xlane.f32.xlu0 %v1745
        %v1747 = vpop.xlane.xlu0 %1746
        %v1748 = vmul.f32 %v1747, %v1523
        %v1749 = vadd.f32 %v1748, 1e-12
        %v1750 = vrsqrt.pop %v1749
        %v1751 = vmul.f32 %v1743, %v1750
        %v1752 = vld [vmem:[#allocation26] sm:$0x1]
        %v1754 = vlaneseq
        %v1755 = vshrl.u32 %v1754, 7
        %v1756 = vsub.s32 0, %v1755
        %v1757 = vrot.slane %v1752, %v1756
        %v1759 = vmul.f32 %v1757, %v1751
        %v1760 = vld [vmem:[#allocation28] sm:$0x1]
        %v1762 = vlaneseq
        %v1763 = vshrl.u32 %v1762, 7
        %v1764 = vsub.s32 0, %v1763
        %v1765 = vrot.slane %v1760, %v1764
        %v1767 = vadd.f32 %v1759, %v1765
        %1768 = vst.msk [vmem:[%s839] sm:$0xff] %vm868, %v1767
        %s1769 = sand.u32 %s442, 1
        %s1770 = scalar_lea.sflag [#allocation4], %s1769
        %s1771 = sand.u32 %s442, 1
        %s1772 = smul.addr %s1771, 8
        %s1773 = scalar_lea.vmem [#allocation29], %s1772
        // Predicated region
        $region157: #{tpu_custom_call.1} parent=87 // pred_check
          %p1774 = pneg %p452
        $region158: #{tpu_custom_call.1} parent=87 // pred_check_branch
          %1776 = sbr.rel (%p1774) target = $region160
        $region159: #{tpu_custom_call.1} parent=87 // pred_region
          %s1778 = ssub.s32 128, 128
          %1779 = vsyncadd %s1770, %s1778
          %s1780 = sadd.s32 %s49, %s48
          %s1781 = smul.addr %s1780, 128
          %s1782 = scalar_lea.hbm %s17, %s1781
          %s1784 = sshll.u32 %s1773, 4
          %s1785 = int_to_ptr.vmem [resolvable:$true] %s1784
          %1787 = dma.vmem_to_hbm [thread:$0]  %s1785, 128, %s1782, %s1770
        $region160: #{tpu_custom_call.1} parent=87 // pred_fallthru
          _
      $region88: #{tpu_custom_call.1} parent=5 // pred_fallthru
        _
      %p1788 = scmp.le.s32.totalorder 2, %s39
      // Predicated region
      $region161: #{tpu_custom_call.1} parent=5 // pred_check
        %p1789 = pneg %p1788
      $region162: #{tpu_custom_call.1} parent=5 // pred_check_branch
        %1791 = sbr.rel (%p1789) target = $region164
      $region163: #{tpu_custom_call.1} parent=5 // pred_region
        %s1792 = ssub.s32 %s39, 2
        // Predicated region
        $region165: #{tpu_custom_call.1} parent=163 // pred_check
          %p1793 = pneg %p458
        $region166: #{tpu_custom_call.1} parent=163 // pred_check_branch
          %1795 = sbr.rel (%p1793) target = $region168
        $region167: #{tpu_custom_call.1} parent=163 // pred_region
          %s1796 = sand.u32 %s443, 1
          %s1797 = scalar_lea.sflag [#allocation4], %s1796
          %s1798 = sand.u32 %s443, 1
          %s1799 = smul.addr %s1798, 8
          %s1800 = scalar_lea.vmem [#allocation29], %s1799
          %1801 = dma.done %s1797, 128
        $region168: #{tpu_custom_call.1} parent=163 // pred_fallthru
          _
      $region164: #{tpu_custom_call.1} parent=5 // pred_fallthru
        _
    $region6: #{tpu_custom_call.1} parent=1 // loop_footer
      %s43 = sadd.s32 1, %s39
    $region7: #{tpu_custom_call.1} parent=1 // loop_footer_branch
      %38 = sbr.rel target = $region3
    $region8: #{tpu_custom_call.1} parent=1 // loop_exit
      _
    %1802 = vsyncpa [#allocation3], 1
    %s1803 = scalar_lea.sflag [#allocation3], 1
    %1804 = vsyncpa %s1803, 1
    %1805 = vsyncpa [#allocation6], 1
    %s1806 = scalar_lea.sflag [#allocation6], 1
    %1807 = vsyncpa %s1806, 1
    %1808 = vsyncpa [#allocation9], 1
    %1809 = vsyncpa [#allocation12], 1
    %1810 = vsyncpa [#allocation15], 1
    %1811 = vsyncpa [#allocation18], 1
    %1812 = vsyncpa [#allocation21], 1
    %1813 = vsyncpa [#allocation24], 1
    %1814 = vsyncpa [#allocation27], 1
    %1815 = vsyncpa [#allocation4], 1
    %s1816 = scalar_lea.sflag [#allocation4], 1
    %1817 = vsyncpa %s1816, 1

</llo_original>
